<compile_context>
chip_gen: v7x
topology: tpu7x:2x2x1
jax: 0.10.0
libtpu: 0.0.40
codegen_flags: <defaults>
</compile_context>

<pallas_src>
import jax
import jax.numpy as jnp
import numpy as np
from jax.experimental import pallas as pl
from jax.experimental.pallas import tpu as pltpu


# ----------------------------------------------------------------------------
# Pallas kernel: LSTM recurrence over precomputed input gates.
#   gx_ref  : (Tc, Bt, 4H)  precomputed  x_t @ W_ih^T + b_ih + b_hh   (f32)
#   whh_ref : (H, 4H)       W_hh^T, resident in VMEM
#   out_ref : (Tc, Bt, H)   per-step hidden states (time-major chunk)
#   h_out_ref, c_out_ref : (Bt, H) final states (written on last chunk only)
#   h_sc, c_sc : (Bt, H) f32 scratch carrying state across time chunks
# ----------------------------------------------------------------------------
def _lstm_recurrent_kernel(gx_ref, whh_ref, out_ref, h_out_ref, c_out_ref,
                           h_sc, c_sc):
    # grid = (batch_tiles, time_chunks); time is the innermost, sequential axis.
    t_chunk = pl.program_id(1)

    @pl.when(t_chunk == 0)
    def _():
        h_sc[...] = jnp.zeros_like(h_sc)
        c_sc[...] = jnp.zeros_like(c_sc)

    H = h_sc.shape[-1]
    Tc = gx_ref.shape[0]

    whh = whh_ref[...]          # (H, 4H) resident weight, read once per chunk
    h = h_sc[...]               # (Bt, H) f32 state, carried in vregs inside the chunk
    c = c_sc[...]

    # Statically unrolled inner time loop: no per-step grid machinery, bias and
    # input projection already folded into gx.
    for t in range(Tc):
        gates = gx_ref[t] + jnp.dot(h.astype(whh.dtype), whh,
                                    preferred_element_type=jnp.float32)  # (Bt, 4H)
        # PyTorch gate order: i, f, g, o.
        # NOTE: for H < 128 these are intra-vreg lane slices (cheap XLU work);
        # for production sizes with H % 128 == 0 they are tile-aligned and free.
        i_g = jax.nn.sigmoid(gates[:, 0 * H:1 * H])
        f_g = jax.nn.sigmoid(gates[:, 1 * H:2 * H])
        g_g = jnp.tanh(gates[:, 2 * H:3 * H])
        o_g = jax.nn.sigmoid(gates[:, 3 * H:4 * H])
        c = f_g * c + i_g * g_g
        h = o_g * jnp.tanh(c)
        # Store into the resident output block; HBM writeback once per chunk.
        out_ref[t] = h

    h_sc[...] = h
    c_sc[...] = c

    # Final (h, c): constant-index output blocks -> write only on the last chunk.
    @pl.when(t_chunk == pl.num_programs(1) - 1)
    def _():
        h_out_ref[...] = h
        c_out_ref[...] = c


def _pick_time_chunk(T, cap=16):
    """Largest Tc <= cap with (Tc % 8 == 0 and Tc | T), else the whole sequence."""
    if T <= cap:
        return T
    for tc in range(cap, 7, -1):
        if tc % 8 == 0 and T % tc == 0:
            return tc
    return T  # whole sequence resident (still correct; just uses more VMEM)


def _pick_batch_tile(B):
    """Sublane-full batch tiles so v7x can shard batch across its 2 TensorCores."""
    if B > 8 and B % 8 == 0:
        return 8
    return B


def lstm_pallas(embedded, w_ih, w_hh, b_ih, b_hh, *, compute_dtype=jnp.float32):
    """embedded: (B, T, E) batch-first. Weights in PyTorch layout (4H,E)/(4H,H)/(4H,).

    Returns (out_tbh (T,B,H), h_last (B,H), c_last (B,H)) in float32.
    """
    B, T, E = embedded.shape
    H4 = w_ih.shape[0]
    H = H4 // 4

    wih_t = jnp.asarray(w_ih).astype(compute_dtype).T     # (E, 4H)
    whh_t = jnp.asarray(w_hh).astype(compute_dtype).T     # (H, 4H)
    bias = (jnp.asarray(b_ih, jnp.float32)
            + jnp.asarray(b_hh, jnp.float32))              # (4H,) fused once

    # Hoisted input projection: one big, fully parallel GEMM over all (t, b) pairs,
    # emitted directly in time-major layout (no separate HBM transpose pass), with
    # the bias fused.  This is off the serial critical path and saturates the MXU.
    gates_x = (jnp.einsum('bte,eg->tbg', embedded.astype(compute_dtype), wih_t,
                          preferred_element_type=jnp.float32)
               + bias)                                     # (T, B, 4H) float32

    Tc = _pick_time_chunk(T)
    Bt = _pick_batch_tile(B)
    grid = (B // Bt, T // Tc)

    grid_spec = pltpu.PrefetchScalarGridSpec(
        num_scalar_prefetch=0,
        grid=grid,
        in_specs=[
            pl.BlockSpec((Tc, Bt, H4), lambda b, c: (c, b, 0)),   # precomputed gates
            pl.BlockSpec((H, H4), lambda b, c: (0, 0)),           # W_hh^T (resident)
        ],
        out_specs=[
            pl.BlockSpec((Tc, Bt, H), lambda b, c: (c, b, 0)),    # per-step hidden
            pl.BlockSpec((Bt, H), lambda b, c: (b, 0)),           # final hidden
            pl.BlockSpec((Bt, H), lambda b, c: (b, 0)),           # final cell
        ],
        scratch_shapes=[
            pltpu.VMEM((Bt, H), jnp.float32),   # h state (always f32)
            pltpu.VMEM((Bt, H), jnp.float32),   # c state (always f32)
        ],
    )

    out_shapes = (
        jax.ShapeDtypeStruct((T, B, H), jnp.float32),
        jax.ShapeDtypeStruct((B, H), jnp.float32),
        jax.ShapeDtypeStruct((B, H), jnp.float32),
    )

    return pl.pallas_call(
        _lstm_recurrent_kernel,
        out_shape=out_shapes,
        grid_spec=grid_spec,
        compiler_params=pltpu.CompilerParams(
            # batch tiles are independent (v7x megacore); time is a true recurrence.
            dimension_semantics=("parallel", "arbitrary")),
    )(gates_x, whh_t)


# ----------------------------------------------------------------------------
# GRUEncoder forward (lengths=None path).  NB: despite its name, the reference
# module uses nn.LSTM, so an LSTM cell is implemented here.
# ----------------------------------------------------------------------------
class GRUEncoderPallas:
    def __init__(self, input_size, hidden_size, voc_size, voc_dim, num_layers=1,
                 key=None, compute_dtype=jnp.float32):
        assert num_layers == 1
        assert input_size == voc_dim, "embedding output feeds the LSTM directly"
        if key is None:
            key = jax.random.PRNGKey(0)
        self.hidden_size = hidden_size
        self.num_layers = num_layers
        self.compute_dtype = compute_dtype   # set jnp.bfloat16 on v6e/v7x
        k = 1.0 / np.sqrt(hidden_size)
        keys = jax.random.split(key, 5)
        # nn.Embedding: N(0,1) init; nn.LSTM: U(-1/sqrt(H), 1/sqrt(H)) init.
        self.embedding = jax.random.normal(keys[0], (voc_size, voc_dim), jnp.float32)
        self.w_ih = jax.random.uniform(keys[1], (4 * hidden_size, input_size),
                                       jnp.float32, -k, k)
        self.w_hh = jax.random.uniform(keys[2], (4 * hidden_size, hidden_size),
                                       jnp.float32, -k, k)
        self.b_ih = jax.random.uniform(keys[3], (4 * hidden_size,), jnp.float32, -k, k)
        self.b_hh = jax.random.uniform(keys[4], (4 * hidden_size,), jnp.float32, -k, k)
        # TODO(synk): Dropout(p=0.4) is declared in the reference but never applied in
        # forward(); intentionally omitted.

    def __call__(self, token_ids, lengths=None):
        # TODO(synk): lengths is only supported as None (matches the benchmarked
        # forward path; pack_padded_sequence has no Pallas analogue).
        assert lengths is None
        embedded = jnp.take(self.embedding, token_ids, axis=0)   # (B, T, E) glue gather
        out_tbh, h_last, c_last = lstm_pallas(
            embedded, self.w_ih, self.w_hh, self.b_ih, self.b_hh,
            compute_dtype=self.compute_dtype)
        output = jnp.swapaxes(out_tbh, 0, 1)                     # (B, T, H) batch_first
        return output, h_last[None], c_last[None]                # (1,B,H), (1,B,H)


# ----------------------------------------------------------------------------
# Pure-JAX reference (lax.scan) for a correctness check.
# ----------------------------------------------------------------------------
def lstm_ref(x_tbe, w_ih, w_hh, b_ih, b_hh):
    T, B, E = x_tbe.shape
    H = w_hh.shape[1]

    def step(carry, x_t):
        h, c = carry
        gates = x_t @ w_ih.T + h @ w_hh.T + b_ih + b_hh
        i = jax.nn.sigmoid(gates[:, 0 * H:1 * H])
        f = jax.nn.sigmoid(gates[:, 1 * H:2 * H])
        g = jnp.tanh(gates[:, 2 * H:3 * H])
        o = jax.nn.sigmoid(gates[:, 3 * H:4 * H])
        c_new = f * c + i * g
        h_new = o * jnp.tanh(c_new)
        return (h_new, c_new), h_new

    h0 = jnp.zeros((B, H), jnp.float32)
    c0 = jnp.zeros((B, H), jnp.float32)
    (h_last, c_last), outs = jax.lax.scan(step, (h0, c0), x_tbe)
    return outs, h_last, c_last


if __name__ == "__main__":
    # Small shapes consistent with the module (embedding output feeds the LSTM,
    # so input_size == voc_dim).
    batch, seq = 2, 8
    voc_size, voc_dim = 16, 32
    input_size, hidden_size = voc_dim, 32

    key = jax.random.PRNGKey(0)
    k_ids, k_params = jax.random.split(key)

    enc = GRUEncoderPallas(input_size, hidden_size, voc_size, voc_dim, key=k_params)
    token_ids = jax.random.randint(k_ids, (batch, seq), 0, voc_size, dtype=jnp.int32)

    output, hidden, cell = enc(token_ids)
    jax.block_until_ready((output, hidden, cell))

    # Sanity check against a pure-JAX reference (f32 compute path -> tight tolerance).
    embedded = jnp.take(enc.embedding, token_ids, axis=0)
    x_tbe = jnp.transpose(embedded, (1, 0, 2))
    out_ref, h_ref, c_ref = lstm_ref(x_tbe, enc.w_ih, enc.w_hh, enc.b_ih, enc.b_hh)
    np.testing.assert_allclose(np.asarray(output),
                               np.asarray(jnp.transpose(out_ref, (1, 0, 2))),
                               rtol=1e-4, atol=1e-4)
    np.testing.assert_allclose(np.asarray(hidden[0]), np.asarray(h_ref),
                               rtol=1e-4, atol=1e-4)
    np.testing.assert_allclose(np.asarray(cell[0]), np.asarray(c_ref),
                               rtol=1e-4, atol=1e-4)

    assert output.shape == (batch, seq, hidden_size)
    assert hidden.shape == (1, batch, hidden_size)
    assert cell.shape == (1, batch, hidden_size)
    print("KERNEL_OK")
</pallas_src>

<mosaic_0001>
module attributes {stable_mosaic.version = 11 : i64} {
  func.func @_lstm_recurrent_kernel(%arg0: i32, %arg1: i32, %arg2: memref<8x2x128xf32, #tpu.memory_space<vmem>>, %arg3: memref<32x128xf32, #tpu.memory_space<vmem>>, %arg4: memref<8x2x32xf32, #tpu.memory_space<vmem>>, %arg5: memref<2x32xf32, #tpu.memory_space<vmem>>, %arg6: memref<2x32xf32, #tpu.memory_space<vmem>>, %arg7: memref<2x32xf32, #tpu.memory_space<vmem>>, %arg8: memref<2x32xf32, #tpu.memory_space<vmem>>) attributes {dimension_semantics = [#tpu.dimension_semantics<parallel>, #tpu.dimension_semantics<arbitrary>], iteration_bounds = array<i64: 1, 1>, scalar_prefetch = 0 : i64, scratch_operands = 2 : i64, tpu.core_type = #tpu.core_type<tc>, window_params = [{transform_indices = @transform_0, window_bounds = array<i64: 8, 2, 128>}, {pipeline_mode = #tpu.pipeline_mode<synchronous>, transform_indices = @transform_1, window_bounds = array<i64: 32, 128>}, {transform_indices = @transform_2, window_bounds = array<i64: 8, 2, 32>}, {transform_indices = @transform_3, window_bounds = array<i64: 2, 32>}, {transform_indices = @transform_4, window_bounds = array<i64: 2, 32>}]} {
    %c0_i32 = arith.constant 0 : i32
    %0 = arith.cmpi eq, %arg1, %c0_i32 : i32
    %1 = arith.extui %0 : i1 to i32
    %c0_i32_0 = arith.constant 0 : i32
    %2 = arith.cmpi ne, %1, %c0_i32_0 : i32
    scf.if %2 {
      %cst_84 = arith.constant 0.000000e+00 : f32
      %267 = vector.broadcast %cst_84 : f32 to vector<2x32xf32>
      %c0_85 = arith.constant 0 : index
      %c0_86 = arith.constant 0 : index
      %268 = vector.load %arg7[%c0_85, %c0_86] : memref<2x32xf32, #tpu.memory_space<vmem>>, vector<2x32xf32>
      tpu.vector_store %arg7[%c0_85, %c0_86], %267 {strides = array<i32>} : memref<2x32xf32, #tpu.memory_space<vmem>>, vector<2x32xf32>,
      %cst_87 = arith.constant 0.000000e+00 : f32
      %269 = vector.broadcast %cst_87 : f32 to vector<2x32xf32>
      %c0_88 = arith.constant 0 : index
      %c0_89 = arith.constant 0 : index
      %270 = vector.load %arg8[%c0_88, %c0_89] : memref<2x32xf32, #tpu.memory_space<vmem>>, vector<2x32xf32>
      tpu.vector_store %arg8[%c0_88, %c0_89], %269 {strides = array<i32>} : memref<2x32xf32, #tpu.memory_space<vmem>>, vector<2x32xf32>,
    } else {
    }
    %c0 = arith.constant 0 : index
    %c0_1 = arith.constant 0 : index
    %3 = vector.load %arg3[%c0, %c0_1] : memref<32x128xf32, #tpu.memory_space<vmem>>, vector<32x128xf32>
    %c0_2 = arith.constant 0 : index
    %c0_3 = arith.constant 0 : index
    %4 = vector.load %arg7[%c0_2, %c0_3] : memref<2x32xf32, #tpu.memory_space<vmem>>, vector<2x32xf32>
    %c0_4 = arith.constant 0 : index
    %c0_5 = arith.constant 0 : index
    %5 = vector.load %arg8[%c0_4, %c0_5] : memref<2x32xf32, #tpu.memory_space<vmem>>, vector<2x32xf32>
    %c0_6 = arith.constant 0 : index
    %c0_7 = arith.constant 0 : index
    %c0_8 = arith.constant 0 : index
    %6 = vector.load %arg2[%c0_6, %c0_7, %c0_8] : memref<8x2x128xf32, #tpu.memory_space<vmem>>, vector<1x2x128xf32>
    %7 = vector.shape_cast %6 : vector<1x2x128xf32> to vector<2x128xf32>
    %cst = arith.constant dense<0.000000e+00> : vector<2x128xf32>
    %8 = tpu.matmul %4, %3, %cst {dimension_numbers = #tpu.dot_dimension_numbers<[1], [0], [0], [1], [0, 0, 1, 1], [], []>} : vector<2x32xf32>, vector<32x128xf32>, vector<2x128xf32> -> vector<2x128xf32>
    %9 = arith.addf %7, %8 : vector<2x128xf32>
    %10 = vector.extract_strided_slice %9 {offsets = [0, 0], sizes = [2, 32], strides = [1, 1]} : vector<2x128xf32> to vector<2x32xf32>
    %11 = arith.negf %10 : vector<2x32xf32>
    %12 = math.exp %11 : vector<2x32xf32>
    %cst_9 = arith.constant 1.000000e+00 : f32
    %13 = vector.broadcast %cst_9 : f32 to vector<2x32xf32>
    %14 = arith.addf %13, %12 : vector<2x32xf32>
    %15 = arith.divf %13, %14 : vector<2x32xf32>
    %16 = vector.extract_strided_slice %9 {offsets = [0, 32], sizes = [2, 32], strides = [1, 1]} : vector<2x128xf32> to vector<2x32xf32>
    %17 = arith.negf %16 : vector<2x32xf32>
    %18 = math.exp %17 : vector<2x32xf32>
    %cst_10 = arith.constant 1.000000e+00 : f32
    %19 = vector.broadcast %cst_10 : f32 to vector<2x32xf32>
    %20 = arith.addf %19, %18 : vector<2x32xf32>
    %21 = arith.divf %19, %20 : vector<2x32xf32>
    %22 = vector.extract_strided_slice %9 {offsets = [0, 64], sizes = [2, 32], strides = [1, 1]} : vector<2x128xf32> to vector<2x32xf32>
    %23 = math.tanh %22 : vector<2x32xf32>
    %24 = vector.extract_strided_slice %9 {offsets = [0, 96], sizes = [2, 32], strides = [1, 1]} : vector<2x128xf32> to vector<2x32xf32>
    %25 = arith.negf %24 : vector<2x32xf32>
    %26 = math.exp %25 : vector<2x32xf32>
    %cst_11 = arith.constant 1.000000e+00 : f32
    %27 = vector.broadcast %cst_11 : f32 to vector<2x32xf32>
    %28 = arith.addf %27, %26 : vector<2x32xf32>
    %29 = arith.divf %27, %28 : vector<2x32xf32>
    %30 = arith.mulf %21, %5 : vector<2x32xf32>
    %31 = arith.mulf %15, %23 : vector<2x32xf32>
    %32 = arith.addf %30, %31 : vector<2x32xf32>
    %33 = math.tanh %32 : vector<2x32xf32>
    %34 = arith.mulf %29, %33 : vector<2x32xf32>
    %c0_12 = arith.constant 0 : index
    %c0_13 = arith.constant 0 : index
    %c0_14 = arith.constant 0 : index
    %35 = vector.load %arg4[%c0_12, %c0_13, %c0_14] : memref<8x2x32xf32, #tpu.memory_space<vmem>>, vector<1x2x32xf32>
    %36 = vector.shape_cast %35 : vector<1x2x32xf32> to vector<2x32xf32>
    %37 = vector.shape_cast %34 : vector<2x32xf32> to vector<1x2x32xf32>
    tpu.vector_store %arg4[%c0_12, %c0_13, %c0_14], %37 {strides = array<i32>} : memref<8x2x32xf32, #tpu.memory_space<vmem>>, vector<1x2x32xf32>,
    %c1 = arith.constant 1 : index
    %c0_15 = arith.constant 0 : index
    %c0_16 = arith.constant 0 : index
    %38 = vector.load %arg2[%c1, %c0_15, %c0_16] : memref<8x2x128xf32, #tpu.memory_space<vmem>>, vector<1x2x128xf32>
    %39 = vector.shape_cast %38 : vector<1x2x128xf32> to vector<2x128xf32>
    %cst_17 = arith.constant dense<0.000000e+00> : vector<2x128xf32>
    %40 = tpu.matmul %34, %3, %cst_17 {dimension_numbers = #tpu.dot_dimension_numbers<[1], [0], [0], [1], [0, 0, 1, 1], [], []>} : vector<2x32xf32>, vector<32x128xf32>, vector<2x128xf32> -> vector<2x128xf32>
    %41 = arith.addf %39, %40 : vector<2x128xf32>
    %42 = vector.extract_strided_slice %41 {offsets = [0, 0], sizes = [2, 32], strides = [1, 1]} : vector<2x128xf32> to vector<2x32xf32>
    %43 = arith.negf %42 : vector<2x32xf32>
    %44 = math.exp %43 : vector<2x32xf32>
    %cst_18 = arith.constant 1.000000e+00 : f32
    %45 = vector.broadcast %cst_18 : f32 to vector<2x32xf32>
    %46 = arith.addf %45, %44 : vector<2x32xf32>
    %47 = arith.divf %45, %46 : vector<2x32xf32>
    %48 = vector.extract_strided_slice %41 {offsets = [0, 32], sizes = [2, 32], strides = [1, 1]} : vector<2x128xf32> to vector<2x32xf32>
    %49 = arith.negf %48 : vector<2x32xf32>
    %50 = math.exp %49 : vector<2x32xf32>
    %cst_19 = arith.constant 1.000000e+00 : f32
    %51 = vector.broadcast %cst_19 : f32 to vector<2x32xf32>
    %52 = arith.addf %51, %50 : vector<2x32xf32>
    %53 = arith.divf %51, %52 : vector<2x32xf32>
    %54 = vector.extract_strided_slice %41 {offsets = [0, 64], sizes = [2, 32], strides = [1, 1]} : vector<2x128xf32> to vector<2x32xf32>
    %55 = math.tanh %54 : vector<2x32xf32>
    %56 = vector.extract_strided_slice %41 {offsets = [0, 96], sizes = [2, 32], strides = [1, 1]} : vector<2x128xf32> to vector<2x32xf32>
    %57 = arith.negf %56 : vector<2x32xf32>
    %58 = math.exp %57 : vector<2x32xf32>
    %cst_20 = arith.constant 1.000000e+00 : f32
    %59 = vector.broadcast %cst_20 : f32 to vector<2x32xf32>
    %60 = arith.addf %59, %58 : vector<2x32xf32>
    %61 = arith.divf %59, %60 : vector<2x32xf32>
    %62 = arith.mulf %53, %32 : vector<2x32xf32>
    %63 = arith.mulf %47, %55 : vector<2x32xf32>
    %64 = arith.addf %62, %63 : vector<2x32xf32>
    %65 = math.tanh %64 : vector<2x32xf32>
    %66 = arith.mulf %61, %65 : vector<2x32xf32>
    %c1_21 = arith.constant 1 : index
    %c0_22 = arith.constant 0 : index
    %c0_23 = arith.constant 0 : index
    %67 = vector.load %arg4[%c1_21, %c0_22, %c0_23] : memref<8x2x32xf32, #tpu.memory_space<vmem>>, vector<1x2x32xf32>
    %68 = vector.shape_cast %67 : vector<1x2x32xf32> to vector<2x32xf32>
    %69 = vector.shape_cast %66 : vector<2x32xf32> to vector<1x2x32xf32>
    tpu.vector_store %arg4[%c1_21, %c0_22, %c0_23], %69 {strides = array<i32>} : memref<8x2x32xf32, #tpu.memory_space<vmem>>, vector<1x2x32xf32>,
    %c2 = arith.constant 2 : index
    %c0_24 = arith.constant 0 : index
    %c0_25 = arith.constant 0 : index
    %70 = vector.load %arg2[%c2, %c0_24, %c0_25] : memref<8x2x128xf32, #tpu.memory_space<vmem>>, vector<1x2x128xf32>
    %71 = vector.shape_cast %70 : vector<1x2x128xf32> to vector<2x128xf32>
    %cst_26 = arith.constant dense<0.000000e+00> : vector<2x128xf32>
    %72 = tpu.matmul %66, %3, %cst_26 {dimension_numbers = #tpu.dot_dimension_numbers<[1], [0], [0], [1], [0, 0, 1, 1], [], []>} : vector<2x32xf32>, vector<32x128xf32>, vector<2x128xf32> -> vector<2x128xf32>
    %73 = arith.addf %71, %72 : vector<2x128xf32>
    %74 = vector.extract_strided_slice %73 {offsets = [0, 0], sizes = [2, 32], strides = [1, 1]} : vector<2x128xf32> to vector<2x32xf32>
    %75 = arith.negf %74 : vector<2x32xf32>
    %76 = math.exp %75 : vector<2x32xf32>
    %cst_27 = arith.constant 1.000000e+00 : f32
    %77 = vector.broadcast %cst_27 : f32 to vector<2x32xf32>
    %78 = arith.addf %77, %76 : vector<2x32xf32>
    %79 = arith.divf %77, %78 : vector<2x32xf32>
    %80 = vector.extract_strided_slice %73 {offsets = [0, 32], sizes = [2, 32], strides = [1, 1]} : vector<2x128xf32> to vector<2x32xf32>
    %81 = arith.negf %80 : vector<2x32xf32>
    %82 = math.exp %81 : vector<2x32xf32>
    %cst_28 = arith.constant 1.000000e+00 : f32
    %83 = vector.broadcast %cst_28 : f32 to vector<2x32xf32>
    %84 = arith.addf %83, %82 : vector<2x32xf32>
    %85 = arith.divf %83, %84 : vector<2x32xf32>
    %86 = vector.extract_strided_slice %73 {offsets = [0, 64], sizes = [2, 32], strides = [1, 1]} : vector<2x128xf32> to vector<2x32xf32>
    %87 = math.tanh %86 : vector<2x32xf32>
    %88 = vector.extract_strided_slice %73 {offsets = [0, 96], sizes = [2, 32], strides = [1, 1]} : vector<2x128xf32> to vector<2x32xf32>
    %89 = arith.negf %88 : vector<2x32xf32>
    %90 = math.exp %89 : vector<2x32xf32>
    %cst_29 = arith.constant 1.000000e+00 : f32
    %91 = vector.broadcast %cst_29 : f32 to vector<2x32xf32>
    %92 = arith.addf %91, %90 : vector<2x32xf32>
    %93 = arith.divf %91, %92 : vector<2x32xf32>
    %94 = arith.mulf %85, %64 : vector<2x32xf32>
    %95 = arith.mulf %79, %87 : vector<2x32xf32>
    %96 = arith.addf %94, %95 : vector<2x32xf32>
    %97 = math.tanh %96 : vector<2x32xf32>
    %98 = arith.mulf %93, %97 : vector<2x32xf32>
    %c2_30 = arith.constant 2 : index
    %c0_31 = arith.constant 0 : index
    %c0_32 = arith.constant 0 : index
    %99 = vector.load %arg4[%c2_30, %c0_31, %c0_32] : memref<8x2x32xf32, #tpu.memory_space<vmem>>, vector<1x2x32xf32>
    %100 = vector.shape_cast %99 : vector<1x2x32xf32> to vector<2x32xf32>
    %101 = vector.shape_cast %98 : vector<2x32xf32> to vector<1x2x32xf32>
    tpu.vector_store %arg4[%c2_30, %c0_31, %c0_32], %101 {strides = array<i32>} : memref<8x2x32xf32, #tpu.memory_space<vmem>>, vector<1x2x32xf32>,
    %c3 = arith.constant 3 : index
    %c0_33 = arith.constant 0 : index
    %c0_34 = arith.constant 0 : index
    %102 = vector.load %arg2[%c3, %c0_33, %c0_34] : memref<8x2x128xf32, #tpu.memory_space<vmem>>, vector<1x2x128xf32>
    %103 = vector.shape_cast %102 : vector<1x2x128xf32> to vector<2x128xf32>
    %cst_35 = arith.constant dense<0.000000e+00> : vector<2x128xf32>
    %104 = tpu.matmul %98, %3, %cst_35 {dimension_numbers = #tpu.dot_dimension_numbers<[1], [0], [0], [1], [0, 0, 1, 1], [], []>} : vector<2x32xf32>, vector<32x128xf32>, vector<2x128xf32> -> vector<2x128xf32>
    %105 = arith.addf %103, %104 : vector<2x128xf32>
    %106 = vector.extract_strided_slice %105 {offsets = [0, 0], sizes = [2, 32], strides = [1, 1]} : vector<2x128xf32> to vector<2x32xf32>
    %107 = arith.negf %106 : vector<2x32xf32>
    %108 = math.exp %107 : vector<2x32xf32>
    %cst_36 = arith.constant 1.000000e+00 : f32
    %109 = vector.broadcast %cst_36 : f32 to vector<2x32xf32>
    %110 = arith.addf %109, %108 : vector<2x32xf32>
    %111 = arith.divf %109, %110 : vector<2x32xf32>
    %112 = vector.extract_strided_slice %105 {offsets = [0, 32], sizes = [2, 32], strides = [1, 1]} : vector<2x128xf32> to vector<2x32xf32>
    %113 = arith.negf %112 : vector<2x32xf32>
    %114 = math.exp %113 : vector<2x32xf32>
    %cst_37 = arith.constant 1.000000e+00 : f32
    %115 = vector.broadcast %cst_37 : f32 to vector<2x32xf32>
    %116 = arith.addf %115, %114 : vector<2x32xf32>
    %117 = arith.divf %115, %116 : vector<2x32xf32>
    %118 = vector.extract_strided_slice %105 {offsets = [0, 64], sizes = [2, 32], strides = [1, 1]} : vector<2x128xf32> to vector<2x32xf32>
    %119 = math.tanh %118 : vector<2x32xf32>
    %120 = vector.extract_strided_slice %105 {offsets = [0, 96], sizes = [2, 32], strides = [1, 1]} : vector<2x128xf32> to vector<2x32xf32>
    %121 = arith.negf %120 : vector<2x32xf32>
    %122 = math.exp %121 : vector<2x32xf32>
    %cst_38 = arith.constant 1.000000e+00 : f32
    %123 = vector.broadcast %cst_38 : f32 to vector<2x32xf32>
    %124 = arith.addf %123, %122 : vector<2x32xf32>
    %125 = arith.divf %123, %124 : vector<2x32xf32>
    %126 = arith.mulf %117, %96 : vector<2x32xf32>
    %127 = arith.mulf %111, %119 : vector<2x32xf32>
    %128 = arith.addf %126, %127 : vector<2x32xf32>
    %129 = math.tanh %128 : vector<2x32xf32>
    %130 = arith.mulf %125, %129 : vector<2x32xf32>
    %c3_39 = arith.constant 3 : index
    %c0_40 = arith.constant 0 : index
    %c0_41 = arith.constant 0 : index
    %131 = vector.load %arg4[%c3_39, %c0_40, %c0_41] : memref<8x2x32xf32, #tpu.memory_space<vmem>>, vector<1x2x32xf32>
    %132 = vector.shape_cast %131 : vector<1x2x32xf32> to vector<2x32xf32>
    %133 = vector.shape_cast %130 : vector<2x32xf32> to vector<1x2x32xf32>
    tpu.vector_store %arg4[%c3_39, %c0_40, %c0_41], %133 {strides = array<i32>} : memref<8x2x32xf32, #tpu.memory_space<vmem>>, vector<1x2x32xf32>,
    %c4 = arith.constant 4 : index
    %c0_42 = arith.constant 0 : index
    %c0_43 = arith.constant 0 : index
    %134 = vector.load %arg2[%c4, %c0_42, %c0_43] : memref<8x2x128xf32, #tpu.memory_space<vmem>>, vector<1x2x128xf32>
    %135 = vector.shape_cast %134 : vector<1x2x128xf32> to vector<2x128xf32>
    %cst_44 = arith.constant dense<0.000000e+00> : vector<2x128xf32>
    %136 = tpu.matmul %130, %3, %cst_44 {dimension_numbers = #tpu.dot_dimension_numbers<[1], [0], [0], [1], [0, 0, 1, 1], [], []>} : vector<2x32xf32>, vector<32x128xf32>, vector<2x128xf32> -> vector<2x128xf32>
    %137 = arith.addf %135, %136 : vector<2x128xf32>
    %138 = vector.extract_strided_slice %137 {offsets = [0, 0], sizes = [2, 32], strides = [1, 1]} : vector<2x128xf32> to vector<2x32xf32>
    %139 = arith.negf %138 : vector<2x32xf32>
    %140 = math.exp %139 : vector<2x32xf32>
    %cst_45 = arith.constant 1.000000e+00 : f32
    %141 = vector.broadcast %cst_45 : f32 to vector<2x32xf32>
    %142 = arith.addf %141, %140 : vector<2x32xf32>
    %143 = arith.divf %141, %142 : vector<2x32xf32>
    %144 = vector.extract_strided_slice %137 {offsets = [0, 32], sizes = [2, 32], strides = [1, 1]} : vector<2x128xf32> to vector<2x32xf32>
    %145 = arith.negf %144 : vector<2x32xf32>
    %146 = math.exp %145 : vector<2x32xf32>
    %cst_46 = arith.constant 1.000000e+00 : f32
    %147 = vector.broadcast %cst_46 : f32 to vector<2x32xf32>
    %148 = arith.addf %147, %146 : vector<2x32xf32>
    %149 = arith.divf %147, %148 : vector<2x32xf32>
    %150 = vector.extract_strided_slice %137 {offsets = [0, 64], sizes = [2, 32], strides = [1, 1]} : vector<2x128xf32> to vector<2x32xf32>
    %151 = math.tanh %150 : vector<2x32xf32>
    %152 = vector.extract_strided_slice %137 {offsets = [0, 96], sizes = [2, 32], strides = [1, 1]} : vector<2x128xf32> to vector<2x32xf32>
    %153 = arith.negf %152 : vector<2x32xf32>
    %154 = math.exp %153 : vector<2x32xf32>
    %cst_47 = arith.constant 1.000000e+00 : f32
    %155 = vector.broadcast %cst_47 : f32 to vector<2x32xf32>
    %156 = arith.addf %155, %154 : vector<2x32xf32>
    %157 = arith.divf %155, %156 : vector<2x32xf32>
    %158 = arith.mulf %149, %128 : vector<2x32xf32>
    %159 = arith.mulf %143, %151 : vector<2x32xf32>
    %160 = arith.addf %158, %159 : vector<2x32xf32>
    %161 = math.tanh %160 : vector<2x32xf32>
    %162 = arith.mulf %157, %161 : vector<2x32xf32>
    %c4_48 = arith.constant 4 : index
    %c0_49 = arith.constant 0 : index
    %c0_50 = arith.constant 0 : index
    %163 = vector.load %arg4[%c4_48, %c0_49, %c0_50] : memref<8x2x32xf32, #tpu.memory_space<vmem>>, vector<1x2x32xf32>
    %164 = vector.shape_cast %163 : vector<1x2x32xf32> to vector<2x32xf32>
    %165 = vector.shape_cast %162 : vector<2x32xf32> to vector<1x2x32xf32>
    tpu.vector_store %arg4[%c4_48, %c0_49, %c0_50], %165 {strides = array<i32>} : memref<8x2x32xf32, #tpu.memory_space<vmem>>, vector<1x2x32xf32>,
    %c5 = arith.constant 5 : index
    %c0_51 = arith.constant 0 : index
    %c0_52 = arith.constant 0 : index
    %166 = vector.load %arg2[%c5, %c0_51, %c0_52] : memref<8x2x128xf32, #tpu.memory_space<vmem>>, vector<1x2x128xf32>
    %167 = vector.shape_cast %166 : vector<1x2x128xf32> to vector<2x128xf32>
    %cst_53 = arith.constant dense<0.000000e+00> : vector<2x128xf32>
    %168 = tpu.matmul %162, %3, %cst_53 {dimension_numbers = #tpu.dot_dimension_numbers<[1], [0], [0], [1], [0, 0, 1, 1], [], []>} : vector<2x32xf32>, vector<32x128xf32>, vector<2x128xf32> -> vector<2x128xf32>
    %169 = arith.addf %167, %168 : vector<2x128xf32>
    %170 = vector.extract_strided_slice %169 {offsets = [0, 0], sizes = [2, 32], strides = [1, 1]} : vector<2x128xf32> to vector<2x32xf32>
    %171 = arith.negf %170 : vector<2x32xf32>
    %172 = math.exp %171 : vector<2x32xf32>
    %cst_54 = arith.constant 1.000000e+00 : f32
    %173 = vector.broadcast %cst_54 : f32 to vector<2x32xf32>
    %174 = arith.addf %173, %172 : vector<2x32xf32>
    %175 = arith.divf %173, %174 : vector<2x32xf32>
    %176 = vector.extract_strided_slice %169 {offsets = [0, 32], sizes = [2, 32], strides = [1, 1]} : vector<2x128xf32> to vector<2x32xf32>
    %177 = arith.negf %176 : vector<2x32xf32>
    %178 = math.exp %177 : vector<2x32xf32>
    %cst_55 = arith.constant 1.000000e+00 : f32
    %179 = vector.broadcast %cst_55 : f32 to vector<2x32xf32>
    %180 = arith.addf %179, %178 : vector<2x32xf32>
    %181 = arith.divf %179, %180 : vector<2x32xf32>
    %182 = vector.extract_strided_slice %169 {offsets = [0, 64], sizes = [2, 32], strides = [1, 1]} : vector<2x128xf32> to vector<2x32xf32>
    %183 = math.tanh %182 : vector<2x32xf32>
    %184 = vector.extract_strided_slice %169 {offsets = [0, 96], sizes = [2, 32], strides = [1, 1]} : vector<2x128xf32> to vector<2x32xf32>
    %185 = arith.negf %184 : vector<2x32xf32>
    %186 = math.exp %185 : vector<2x32xf32>
    %cst_56 = arith.constant 1.000000e+00 : f32
    %187 = vector.broadcast %cst_56 : f32 to vector<2x32xf32>
    %188 = arith.addf %187, %186 : vector<2x32xf32>
    %189 = arith.divf %187, %188 : vector<2x32xf32>
    %190 = arith.mulf %181, %160 : vector<2x32xf32>
    %191 = arith.mulf %175, %183 : vector<2x32xf32>
    %192 = arith.addf %190, %191 : vector<2x32xf32>
    %193 = math.tanh %192 : vector<2x32xf32>
    %194 = arith.mulf %189, %193 : vector<2x32xf32>
    %c5_57 = arith.constant 5 : index
    %c0_58 = arith.constant 0 : index
    %c0_59 = arith.constant 0 : index
    %195 = vector.load %arg4[%c5_57, %c0_58, %c0_59] : memref<8x2x32xf32, #tpu.memory_space<vmem>>, vector<1x2x32xf32>
    %196 = vector.shape_cast %195 : vector<1x2x32xf32> to vector<2x32xf32>
    %197 = vector.shape_cast %194 : vector<2x32xf32> to vector<1x2x32xf32>
    tpu.vector_store %arg4[%c5_57, %c0_58, %c0_59], %197 {strides = array<i32>} : memref<8x2x32xf32, #tpu.memory_space<vmem>>, vector<1x2x32xf32>,
    %c6 = arith.constant 6 : index
    %c0_60 = arith.constant 0 : index
    %c0_61 = arith.constant 0 : index
    %198 = vector.load %arg2[%c6, %c0_60, %c0_61] : memref<8x2x128xf32, #tpu.memory_space<vmem>>, vector<1x2x128xf32>
    %199 = vector.shape_cast %198 : vector<1x2x128xf32> to vector<2x128xf32>
    %cst_62 = arith.constant dense<0.000000e+00> : vector<2x128xf32>
    %200 = tpu.matmul %194, %3, %cst_62 {dimension_numbers = #tpu.dot_dimension_numbers<[1], [0], [0], [1], [0, 0, 1, 1], [], []>} : vector<2x32xf32>, vector<32x128xf32>, vector<2x128xf32> -> vector<2x128xf32>
    %201 = arith.addf %199, %200 : vector<2x128xf32>
    %202 = vector.extract_strided_slice %201 {offsets = [0, 0], sizes = [2, 32], strides = [1, 1]} : vector<2x128xf32> to vector<2x32xf32>
    %203 = arith.negf %202 : vector<2x32xf32>
    %204 = math.exp %203 : vector<2x32xf32>
    %cst_63 = arith.constant 1.000000e+00 : f32
    %205 = vector.broadcast %cst_63 : f32 to vector<2x32xf32>
    %206 = arith.addf %205, %204 : vector<2x32xf32>
    %207 = arith.divf %205, %206 : vector<2x32xf32>
    %208 = vector.extract_strided_slice %201 {offsets = [0, 32], sizes = [2, 32], strides = [1, 1]} : vector<2x128xf32> to vector<2x32xf32>
    %209 = arith.negf %208 : vector<2x32xf32>
    %210 = math.exp %209 : vector<2x32xf32>
    %cst_64 = arith.constant 1.000000e+00 : f32
    %211 = vector.broadcast %cst_64 : f32 to vector<2x32xf32>
    %212 = arith.addf %211, %210 : vector<2x32xf32>
    %213 = arith.divf %211, %212 : vector<2x32xf32>
    %214 = vector.extract_strided_slice %201 {offsets = [0, 64], sizes = [2, 32], strides = [1, 1]} : vector<2x128xf32> to vector<2x32xf32>
    %215 = math.tanh %214 : vector<2x32xf32>
    %216 = vector.extract_strided_slice %201 {offsets = [0, 96], sizes = [2, 32], strides = [1, 1]} : vector<2x128xf32> to vector<2x32xf32>
    %217 = arith.negf %216 : vector<2x32xf32>
    %218 = math.exp %217 : vector<2x32xf32>
    %cst_65 = arith.constant 1.000000e+00 : f32
    %219 = vector.broadcast %cst_65 : f32 to vector<2x32xf32>
    %220 = arith.addf %219, %218 : vector<2x32xf32>
    %221 = arith.divf %219, %220 : vector<2x32xf32>
    %222 = arith.mulf %213, %192 : vector<2x32xf32>
    %223 = arith.mulf %207, %215 : vector<2x32xf32>
    %224 = arith.addf %222, %223 : vector<2x32xf32>
    %225 = math.tanh %224 : vector<2x32xf32>
    %226 = arith.mulf %221, %225 : vector<2x32xf32>
    %c6_66 = arith.constant 6 : index
    %c0_67 = arith.constant 0 : index
    %c0_68 = arith.constant 0 : index
    %227 = vector.load %arg4[%c6_66, %c0_67, %c0_68] : memref<8x2x32xf32, #tpu.memory_space<vmem>>, vector<1x2x32xf32>
    %228 = vector.shape_cast %227 : vector<1x2x32xf32> to vector<2x32xf32>
    %229 = vector.shape_cast %226 : vector<2x32xf32> to vector<1x2x32xf32>
    tpu.vector_store %arg4[%c6_66, %c0_67, %c0_68], %229 {strides = array<i32>} : memref<8x2x32xf32, #tpu.memory_space<vmem>>, vector<1x2x32xf32>,
    %c7 = arith.constant 7 : index
    %c0_69 = arith.constant 0 : index
    %c0_70 = arith.constant 0 : index
    %230 = vector.load %arg2[%c7, %c0_69, %c0_70] : memref<8x2x128xf32, #tpu.memory_space<vmem>>, vector<1x2x128xf32>
    %231 = vector.shape_cast %230 : vector<1x2x128xf32> to vector<2x128xf32>
    %cst_71 = arith.constant dense<0.000000e+00> : vector<2x128xf32>
    %232 = tpu.matmul %226, %3, %cst_71 {dimension_numbers = #tpu.dot_dimension_numbers<[1], [0], [0], [1], [0, 0, 1, 1], [], []>} : vector<2x32xf32>, vector<32x128xf32>, vector<2x128xf32> -> vector<2x128xf32>
    %233 = arith.addf %231, %232 : vector<2x128xf32>
    %234 = vector.extract_strided_slice %233 {offsets = [0, 0], sizes = [2, 32], strides = [1, 1]} : vector<2x128xf32> to vector<2x32xf32>
    %235 = arith.negf %234 : vector<2x32xf32>
    %236 = math.exp %235 : vector<2x32xf32>
    %cst_72 = arith.constant 1.000000e+00 : f32
    %237 = vector.broadcast %cst_72 : f32 to vector<2x32xf32>
    %238 = arith.addf %237, %236 : vector<2x32xf32>
    %239 = arith.divf %237, %238 : vector<2x32xf32>
    %240 = vector.extract_strided_slice %233 {offsets = [0, 32], sizes = [2, 32], strides = [1, 1]} : vector<2x128xf32> to vector<2x32xf32>
    %241 = arith.negf %240 : vector<2x32xf32>
    %242 = math.exp %241 : vector<2x32xf32>
    %cst_73 = arith.constant 1.000000e+00 : f32
    %243 = vector.broadcast %cst_73 : f32 to vector<2x32xf32>
    %244 = arith.addf %243, %242 : vector<2x32xf32>
    %245 = arith.divf %243, %244 : vector<2x32xf32>
    %246 = vector.extract_strided_slice %233 {offsets = [0, 64], sizes = [2, 32], strides = [1, 1]} : vector<2x128xf32> to vector<2x32xf32>
    %247 = math.tanh %246 : vector<2x32xf32>
    %248 = vector.extract_strided_slice %233 {offsets = [0, 96], sizes = [2, 32], strides = [1, 1]} : vector<2x128xf32> to vector<2x32xf32>
    %249 = arith.negf %248 : vector<2x32xf32>
    %250 = math.exp %249 : vector<2x32xf32>
    %cst_74 = arith.constant 1.000000e+00 : f32
    %251 = vector.broadcast %cst_74 : f32 to vector<2x32xf32>
    %252 = arith.addf %251, %250 : vector<2x32xf32>
    %253 = arith.divf %251, %252 : vector<2x32xf32>
    %254 = arith.mulf %245, %224 : vector<2x32xf32>
    %255 = arith.mulf %239, %247 : vector<2x32xf32>
    %256 = arith.addf %254, %255 : vector<2x32xf32>
    %257 = math.tanh %256 : vector<2x32xf32>
    %258 = arith.mulf %253, %257 : vector<2x32xf32>
    %c7_75 = arith.constant 7 : index
    %c0_76 = arith.constant 0 : index
    %c0_77 = arith.constant 0 : index
    %259 = vector.load %arg4[%c7_75, %c0_76, %c0_77] : memref<8x2x32xf32, #tpu.memory_space<vmem>>, vector<1x2x32xf32>
    %260 = vector.shape_cast %259 : vector<1x2x32xf32> to vector<2x32xf32>
    %261 = vector.shape_cast %258 : vector<2x32xf32> to vector<1x2x32xf32>
    tpu.vector_store %arg4[%c7_75, %c0_76, %c0_77], %261 {strides = array<i32>} : memref<8x2x32xf32, #tpu.memory_space<vmem>>, vector<1x2x32xf32>,
    %c0_78 = arith.constant 0 : index
    %c0_79 = arith.constant 0 : index
    %262 = vector.load %arg7[%c0_78, %c0_79] : memref<2x32xf32, #tpu.memory_space<vmem>>, vector<2x32xf32>
    tpu.vector_store %arg7[%c0_78, %c0_79], %258 {strides = array<i32>} : memref<2x32xf32, #tpu.memory_space<vmem>>, vector<2x32xf32>,
    %c0_80 = arith.constant 0 : index
    %c0_81 = arith.constant 0 : index
    %263 = vector.load %arg8[%c0_80, %c0_81] : memref<2x32xf32, #tpu.memory_space<vmem>>, vector<2x32xf32>
    tpu.vector_store %arg8[%c0_80, %c0_81], %256 {strides = array<i32>} : memref<2x32xf32, #tpu.memory_space<vmem>>, vector<2x32xf32>,
    %c0_i32_82 = arith.constant 0 : i32
    %264 = arith.cmpi eq, %arg1, %c0_i32_82 : i32
    %265 = arith.extui %264 : i1 to i32
    %c0_i32_83 = arith.constant 0 : i32
    %266 = arith.cmpi ne, %265, %c0_i32_83 : i32
    scf.if %266 {
      %c0_84 = arith.constant 0 : index
      %c0_85 = arith.constant 0 : index
      %267 = vector.load %arg5[%c0_84, %c0_85] : memref<2x32xf32, #tpu.memory_space<vmem>>, vector<2x32xf32>
      tpu.vector_store %arg5[%c0_84, %c0_85], %258 {strides = array<i32>} : memref<2x32xf32, #tpu.memory_space<vmem>>, vector<2x32xf32>,
      %c0_86 = arith.constant 0 : index
      %c0_87 = arith.constant 0 : index
      %268 = vector.load %arg6[%c0_86, %c0_87] : memref<2x32xf32, #tpu.memory_space<vmem>>, vector<2x32xf32>
      tpu.vector_store %arg6[%c0_86, %c0_87], %256 {strides = array<i32>} : memref<2x32xf32, #tpu.memory_space<vmem>>, vector<2x32xf32>,
    } else {
    }
    return
  }
  func.func @transform_0(%arg0: i32, %arg1: i32) -> (i32, i32, i32) {
    %c0_i32 = arith.constant 0 : i32
    %c0_i32_0 = arith.constant 0 : i32
    return %arg1, %arg0, %c0_i32 : i32, i32, i32
  }
  func.func @transform_1(%arg0: i32, %arg1: i32) -> (i32, i32) {
    %c0_i32 = arith.constant 0 : i32
    %c0_i32_0 = arith.constant 0 : i32
    %c0_i32_1 = arith.constant 0 : i32
    return %c0_i32, %c0_i32_0 : i32, i32
  }
  func.func @transform_2(%arg0: i32, %arg1: i32) -> (i32, i32, i32) {
    %c0_i32 = arith.constant 0 : i32
    %c0_i32_0 = arith.constant 0 : i32
    return %arg1, %arg0, %c0_i32 : i32, i32, i32
  }
  func.func @transform_3(%arg0: i32, %arg1: i32) -> (i32, i32) {
    %c0_i32 = arith.constant 0 : i32
    %c0_i32_0 = arith.constant 0 : i32
    return %arg0, %c0_i32 : i32, i32
  }
  func.func @transform_4(%arg0: i32, %arg1: i32) -> (i32, i32) {
    %c0_i32 = arith.constant 0 : i32
    %c0_i32_0 = arith.constant 0 : i32
    return %arg0, %c0_i32 : i32, i32
  }
}

</mosaic_0001>

<llo_original>
// kernel: tpu_custom_call.1
$region0: #{tpu_custom_call.1}
  #allocation0 [shape = 'u32[]', space=smem, size = 0x4, offset = 0x4, fixed_abs, tag = 'smem constant byte address 0x4 - core index']
  #allocation1 [shape = 'u32[144,128]{1,0:T(1,128)}', space=vmem, size = 0x12000, scoped, tag = 'internal scratch']
  #allocation2 [shape = 'f32[2,32]{1,0:T(2,128)}', space=vmem, size = 0x400, scoped, tag = 'scratch operand']
  #allocation3 [shape = 'f32[2,32]{1,0:T(2,128)}', space=vmem, size = 0x400, scoped, tag = 'scratch operand']
  %s0 = inlined_call_operand.hbm [shape: f32[8,2,128], index: 0, kind: input, shape index: {}]
  %s1 = inlined_call_operand.hbm [shape: f32[32,128], index: 1, kind: input, shape index: {}]
  %s2 = inlined_call_operand.hbm [shape: f32[8,2,32], index: 2, kind: output, shape index: {0}]
  %s3 = inlined_call_operand.hbm [shape: f32[2,32], index: 3, kind: output, shape index: {1}]
  %s4 = inlined_call_operand.hbm [shape: f32[2,32], index: 4, kind: output, shape index: {2}]
  %5 = xla_tuple %s2, %s3, %s4
  %s6 = sld [smem:[#allocation0]]
  $region50: #{tpu_custom_call.1} parent=0
    _
  %s8 = ssub.s32 1, %s6
  %s9 = scalar_select 0, %s8, %s6
  $region1: #{tpu_custom_call.1} parent=0
    #allocation4 [shape = 'u8[8192]{0}', space=vmem, size = 0x2000, scoped, tag = 'input window, operand 0, single buffered']
    #allocation5 [shape = 's32[1]{0}', space=sflag, size = 0x4, scoped, tag = 'scoped memory for tpu_custom_call.1']
    #allocation6 [shape = 's32[1]{0}', space=sflag, size = 0x4, scoped, tag = 'scoped memory for tpu_custom_call.1']
    #allocation7 [shape = 'u8[16384]{0}', space=vmem, size = 0x4000, scoped, tag = 'input window, operand 1, single buffered']
    #allocation8 [shape = 's32[1]{0}', space=sflag, size = 0x4, scoped, tag = 'scoped memory for tpu_custom_call.1']
    #allocation9 [shape = 'u8[8192]{0}', space=vmem, size = 0x2000, scoped, tag = 'output window, operand 0, single buffered']
    #allocation10 [shape = 'u8[1024]{0}', space=vmem, size = 0x400, scoped, tag = 'output window, operand 1, single buffered']
    #allocation11 [shape = 's32[1]{0}', space=sflag, size = 0x4, scoped, tag = 'scoped memory for tpu_custom_call.1']
    #allocation12 [shape = 'u8[1024]{0}', space=vmem, size = 0x400, scoped, tag = 'output window, operand 2, single buffered']
    %10 = vsyncpa [#allocation5], 0
    %11 = vsyncpa [#allocation8], 0
    %12 = vsyncpa [#allocation6], 0
    %13 = vsyncpa [#allocation11], 0
    // Predicated region
    $region2: #{tpu_custom_call.1} parent=1 // pred_check
      _
    $region3: #{tpu_custom_call.1} parent=1 // pred_check_branch
      %15 = sbr.rel (0) target = $region5
    $region4: #{tpu_custom_call.1} parent=1 // pred_region
      %s17 = ssub.s32 256, 256
      %18 = vsyncadd [#allocation5], %s17
      %s19 = sshll.u32 [#allocation4], 4
      %s20 = int_to_ptr.vmem [resolvable:$true] %s19
      %25 = dma.hbm_to_vmem [thread:$0]  %s0, 256, %s20, [#allocation5], 32, 32, 2
    $region5: #{tpu_custom_call.1} parent=1 // pred_fallthru
      _
    // Predicated region
    $region6: #{tpu_custom_call.1} parent=1 // pred_check
      _
    $region7: #{tpu_custom_call.1} parent=1 // pred_check_branch
      %27 = sbr.rel (0) target = $region9
    $region8: #{tpu_custom_call.1} parent=1 // pred_region
      %s29 = ssub.s32 512, 512
      %30 = vsyncadd [#allocation8], %s29
      %s31 = sshll.u32 [#allocation7], 4
      %s32 = int_to_ptr.vmem [resolvable:$true] %s31
      %37 = dma.hbm_to_vmem [thread:$0]  %s1, 512, %s32, [#allocation8], 128, 128, 8
    $region9: #{tpu_custom_call.1} parent=1 // pred_fallthru
      _
    // Predicated region
    $region10: #{tpu_custom_call.1} parent=1 // pred_check
      _
    $region11: #{tpu_custom_call.1} parent=1 // pred_check_branch
      %39 = sbr.rel (0) target = $region13
    $region12: #{tpu_custom_call.1} parent=1 // pred_region
      %40 = dma.done [#allocation5], 256
    $region13: #{tpu_custom_call.1} parent=1 // pred_fallthru
      _
    // Predicated region
    $region14: #{tpu_custom_call.1} parent=1 // pred_check
      _
    $region15: #{tpu_custom_call.1} parent=1 // pred_check_branch
      %42 = sbr.rel (0) target = $region17
    $region16: #{tpu_custom_call.1} parent=1 // pred_region
      %43 = dma.done [#allocation8], 512
    $region17: #{tpu_custom_call.1} parent=1 // pred_fallthru
      _
    %p44 = scmp.eq.s32.totalorder 0, 0
    // Predicated region
    $region18: #{tpu_custom_call.1} parent=1 // pred_check
      %p45 = pneg %p44
    $region19: #{tpu_custom_call.1} parent=1 // pred_check_branch
      %47 = sbr.rel (%p45) target = $region21
    $region20: #{tpu_custom_call.1} parent=1 // pred_region
      %vm48 = vcmask 254976
      %49 = vst.msk [vmem:[#allocation2] sm:$0x3] %vm48, 0.0
      %50 = vst.msk [vmem:[#allocation3] sm:$0x3] %vm48, 0.0
    $region21: #{tpu_custom_call.1} parent=1 // pred_fallthru
      _
    %v51 = vld [vmem:[#allocation7] sm:$0xff]
    %v52 = vld [vmem:[#allocation7 + $0x8] sm:$0xff]
    %v53 = vld [vmem:[#allocation7 + $0x10] sm:$0xff]
    %v54 = vld [vmem:[#allocation7 + $0x18] sm:$0xff]
    %v55 = vld [vmem:[#allocation2] sm:$0x3]
    %v56 = vld [vmem:[#allocation3] sm:$0x3]
    %v57 = vld [vmem:[#allocation4] sm:$0x3]
    %vm58 = vcmask 261120
    %v60 = vsel %vm58, %v55, 0
    %62 = vmatprep.subr.mxu0 0.0
    %63 = vmatpush1.msra.mxu0 %v51
    %64 = vmatprep.subr.mxu0 0.0
    %65 = vmatpush1.msra.mxu0 %v52
    %66 = vmatprep.subr.mxu0 0.0
    %67 = vmatpush1.msra.mxu0 %v53
    %68 = vmatprep.subr.mxu0 0.0
    %69 = vmatpush1.msra.mxu0 %v54
    %70 = vmatprep.subr.mxu0 0.0
    %71 = vmatpush1.msra.mxu0 0.0
    %72 = vmatprep.subr.mxu0 0.0
    %73 = vmatpush1.msra.mxu0 0.0
    %74 = vmatprep.subr.mxu0 0.0
    %75 = vmatpush1.msra.mxu0 0.0
    %76 = vmatprep.subr.mxu0 0.0
    %77 = vmatpush1.msra.mxu0 0.0
    %78 = vmatprep.subr.mxu0 0.0
    %79 = vmatpush1.msra.mxu0 0.0
    %80 = vmatprep.subr.mxu0 0.0
    %81 = vmatpush1.msra.mxu0 0.0
    %82 = vmatprep.subr.mxu0 0.0
    %83 = vmatpush1.msra.mxu0 0.0
    %84 = vmatprep.subr.mxu0 0.0
    %85 = vmatpush1.msra.mxu0 0.0
    %86 = vmatprep.subr.mxu0 0.0
    %87 = vmatpush1.msra.mxu0 0.0
    %88 = vmatprep.subr.mxu0 0.0
    %89 = vmatpush1.msra.mxu0 0.0
    %90 = vmatprep.subr.mxu0 0.0
    %91 = vmatpush1.msra.mxu0 0.0
    %92 = vmatprep.subr.mxu0 0.0
    %93 = vmatpush1.msra.mxu0 0.0
    %94 = vmatprep.subr.mxu0 0.0
    %95 = vmatpush1.msra.mxu0 0.0
    %96 = vmatprep.subr.mxu0 0.0
    %97 = vmatpush1.msra.mxu0 0.0
    %98 = vmatprep.subr.mxu0 0.0
    %99 = vmatpush1.msra.mxu0 0.0
    %100 = vmatprep.subr.mxu0 0.0
    %101 = vmatpush1.msra.mxu0 0.0
    %102 = vmatprep.subr.mxu0 0.0
    %103 = vmatpush1.msra.mxu0 0.0
    %104 = vmatprep.subr.mxu0 0.0
    %105 = vmatpush1.msra.mxu0 0.0
    %106 = vmatprep.subr.mxu0 0.0
    %107 = vmatpush1.msra.mxu0 0.0
    %108 = vmatprep.subr.mxu0 0.0
    %109 = vmatpush1.msra.mxu0 0.0
    %110 = vmatprep.subr.mxu0 0.0
    %111 = vmatpush1.msra.mxu0 0.0
    %112 = vmatprep.subr.mxu0 0.0
    %113 = vmatpush1.msra.mxu0 0.0
    %114 = vmatprep.subr.mxu0 0.0
    %115 = vmatpush1.msra.mxu0 0.0
    %116 = vmatprep.subr.mxu0 0.0
    %117 = vmatpush1.msra.mxu0 0.0
    %118 = vmatprep.subr.mxu0 0.0
    %119 = vmatpush1.msra.mxu0 0.0
    %120 = vmatprep.subr.mxu0 0.0
    %121 = vmatpush1.msra.mxu0 0.0
    %122 = vmatprep.subr.mxu0 0.0
    %123 = vmatpush1.msra.mxu0 0.0
    %124 = vmatprep.subr.mxu0 0.0
    %125 = vmatpush1.msra.mxu0 0.0
    %126 = vmatprep.mubr.f32.mxu0 0.0
    %127 = vmatmul.mubr.f32.gmra.mrb[0].mxu0 %v60
    %v128 = vpop.f32.mrb[0].mxu0
    %v129 = vadd.f32 0.0, %v128
    %v130 = vpop.f32.mrb[0].mxu0
    %131 = vdwg.mxu0
    %v132 = vadd.f32 %v57, %v129
    %v133 = vxor.u32 %v132, 2147483648
    %v134 = vmul.f32 %v133, 1.442695
    %v135 = vpow.pop %v134
    %v136 = vadd.f32 %v135, 1.0
    %v137 = vrcp.pop %v136
    %v138 = vmul.f32 1.0, %v137
    %v139 = vtanh.pop %v132
    %141 = vrot.lane.b32.xlu0 %v56, 32
    %v142 = vpop.permute.xlu0 %141
    %v144 = vmul.f32 %v138, %v142
    %146 = vrot.lane.b32.xlu0 %v139, 64
    %v147 = vpop.permute.xlu0 %146
    %v149 = vmul.f32 %v138, %v147
    %151 = vrot.lane.b32.xlu0 %v149, 32
    %v152 = vpop.permute.xlu0 %151
    %v154 = vadd.f32 %v144, %v152
    %v155 = vtanh.pop %v154
    %157 = vrot.lane.b32.xlu0 %v155, 64
    %v158 = vpop.permute.xlu0 %157
    %v160 = vmul.f32 %v138, %v158
    %162 = vrot.lane.b32.xlu0 %v160, 32
    %v163 = vpop.permute.xlu0 %162
    %vm165 = vcmask 254976
    %166 = vst.msk [vmem:[#allocation9] sm:$0x3] %vm165, %v163
    %s167 = scalar_lea.vmem [#allocation4], 2
    %v168 = vld [vmem:[%s167] sm:$0x3]
    %v169 = vsel %vm58, %v163, 0
    %171 = vmatprep.subr.mxu0 0.0
    %172 = vmatpush1.msra.mxu0 %v51
    %173 = vmatprep.subr.mxu0 0.0
    %174 = vmatpush1.msra.mxu0 %v52
    %175 = vmatprep.subr.mxu0 0.0
    %176 = vmatpush1.msra.mxu0 %v53
    %177 = vmatprep.subr.mxu0 0.0
    %178 = vmatpush1.msra.mxu0 %v54
    %179 = vmatprep.subr.mxu0 0.0
    %180 = vmatpush1.msra.mxu0 0.0
    %181 = vmatprep.subr.mxu0 0.0
    %182 = vmatpush1.msra.mxu0 0.0
    %183 = vmatprep.subr.mxu0 0.0
    %184 = vmatpush1.msra.mxu0 0.0
    %185 = vmatprep.subr.mxu0 0.0
    %186 = vmatpush1.msra.mxu0 0.0
    %187 = vmatprep.subr.mxu0 0.0
    %188 = vmatpush1.msra.mxu0 0.0
    %189 = vmatprep.subr.mxu0 0.0
    %190 = vmatpush1.msra.mxu0 0.0
    %191 = vmatprep.subr.mxu0 0.0
    %192 = vmatpush1.msra.mxu0 0.0
    %193 = vmatprep.subr.mxu0 0.0
    %194 = vmatpush1.msra.mxu0 0.0
    %195 = vmatprep.subr.mxu0 0.0
    %196 = vmatpush1.msra.mxu0 0.0
    %197 = vmatprep.subr.mxu0 0.0
    %198 = vmatpush1.msra.mxu0 0.0
    %199 = vmatprep.subr.mxu0 0.0
    %200 = vmatpush1.msra.mxu0 0.0
    %201 = vmatprep.subr.mxu0 0.0
    %202 = vmatpush1.msra.mxu0 0.0
    %203 = vmatprep.subr.mxu0 0.0
    %204 = vmatpush1.msra.mxu0 0.0
    %205 = vmatprep.subr.mxu0 0.0
    %206 = vmatpush1.msra.mxu0 0.0
    %207 = vmatprep.subr.mxu0 0.0
    %208 = vmatpush1.msra.mxu0 0.0
    %209 = vmatprep.subr.mxu0 0.0
    %210 = vmatpush1.msra.mxu0 0.0
    %211 = vmatprep.subr.mxu0 0.0
    %212 = vmatpush1.msra.mxu0 0.0
    %213 = vmatprep.subr.mxu0 0.0
    %214 = vmatpush1.msra.mxu0 0.0
    %215 = vmatprep.subr.mxu0 0.0
    %216 = vmatpush1.msra.mxu0 0.0
    %217 = vmatprep.subr.mxu0 0.0
    %218 = vmatpush1.msra.mxu0 0.0
    %219 = vmatprep.subr.mxu0 0.0
    %220 = vmatpush1.msra.mxu0 0.0
    %221 = vmatprep.subr.mxu0 0.0
    %222 = vmatpush1.msra.mxu0 0.0
    %223 = vmatprep.subr.mxu0 0.0
    %224 = vmatpush1.msra.mxu0 0.0
    %225 = vmatprep.subr.mxu0 0.0
    %226 = vmatpush1.msra.mxu0 0.0
    %227 = vmatprep.subr.mxu0 0.0
    %228 = vmatpush1.msra.mxu0 0.0
    %229 = vmatprep.subr.mxu0 0.0
    %230 = vmatpush1.msra.mxu0 0.0
    %231 = vmatprep.subr.mxu0 0.0
    %232 = vmatpush1.msra.mxu0 0.0
    %233 = vmatprep.subr.mxu0 0.0
    %234 = vmatpush1.msra.mxu0 0.0
    %235 = vmatprep.mubr.f32.mxu0 0.0
    %236 = vmatmul.mubr.f32.gmra.mrb[0].mxu0 %v169
    %v237 = vpop.f32.mrb[0].mxu0
    %v238 = vadd.f32 0.0, %v237
    %v239 = vpop.f32.mrb[0].mxu0
    %240 = vdwg.mxu0
    %v241 = vadd.f32 %v168, %v238
    %v242 = vxor.u32 %v241, 2147483648
    %v243 = vmul.f32 %v242, 1.442695
    %v244 = vpow.pop %v243
    %v245 = vadd.f32 %v244, 1.0
    %v246 = vrcp.pop %v245
    %v247 = vmul.f32 1.0, %v246
    %v248 = vtanh.pop %v241
    %v249 = vmul.f32 %v247, %v154
    %251 = vrot.lane.b32.xlu0 %v248, 64
    %v252 = vpop.permute.xlu0 %251
    %v254 = vmul.f32 %v247, %v252
    %256 = vrot.lane.b32.xlu0 %v254, 32
    %v257 = vpop.permute.xlu0 %256
    %v259 = vadd.f32 %v249, %v257
    %v260 = vtanh.pop %v259
    %262 = vrot.lane.b32.xlu0 %v260, 64
    %v263 = vpop.permute.xlu0 %262
    %v265 = vmul.f32 %v247, %v263
    %267 = vrot.lane.b32.xlu0 %v265, 32
    %v268 = vpop.permute.xlu0 %267
    %s270 = scalar_lea.vmem [#allocation9], 2
    %271 = vst.msk [vmem:[%s270] sm:$0x3] %vm165, %v268
    %s272 = scalar_lea.vmem [#allocation4], 4
    %v273 = vld [vmem:[%s272] sm:$0x3]
    %v274 = vsel %vm58, %v268, 0
    %276 = vmatprep.subr.mxu0 0.0
    %277 = vmatpush1.msra.mxu0 %v51
    %278 = vmatprep.subr.mxu0 0.0
    %279 = vmatpush1.msra.mxu0 %v52
    %280 = vmatprep.subr.mxu0 0.0
    %281 = vmatpush1.msra.mxu0 %v53
    %282 = vmatprep.subr.mxu0 0.0
    %283 = vmatpush1.msra.mxu0 %v54
    %284 = vmatprep.subr.mxu0 0.0
    %285 = vmatpush1.msra.mxu0 0.0
    %286 = vmatprep.subr.mxu0 0.0
    %287 = vmatpush1.msra.mxu0 0.0
    %288 = vmatprep.subr.mxu0 0.0
    %289 = vmatpush1.msra.mxu0 0.0
    %290 = vmatprep.subr.mxu0 0.0
    %291 = vmatpush1.msra.mxu0 0.0
    %292 = vmatprep.subr.mxu0 0.0
    %293 = vmatpush1.msra.mxu0 0.0
    %294 = vmatprep.subr.mxu0 0.0
    %295 = vmatpush1.msra.mxu0 0.0
    %296 = vmatprep.subr.mxu0 0.0
    %297 = vmatpush1.msra.mxu0 0.0
    %298 = vmatprep.subr.mxu0 0.0
    %299 = vmatpush1.msra.mxu0 0.0
    %300 = vmatprep.subr.mxu0 0.0
    %301 = vmatpush1.msra.mxu0 0.0
    %302 = vmatprep.subr.mxu0 0.0
    %303 = vmatpush1.msra.mxu0 0.0
    %304 = vmatprep.subr.mxu0 0.0
    %305 = vmatpush1.msra.mxu0 0.0
    %306 = vmatprep.subr.mxu0 0.0
    %307 = vmatpush1.msra.mxu0 0.0
    %308 = vmatprep.subr.mxu0 0.0
    %309 = vmatpush1.msra.mxu0 0.0
    %310 = vmatprep.subr.mxu0 0.0
    %311 = vmatpush1.msra.mxu0 0.0
    %312 = vmatprep.subr.mxu0 0.0
    %313 = vmatpush1.msra.mxu0 0.0
    %314 = vmatprep.subr.mxu0 0.0
    %315 = vmatpush1.msra.mxu0 0.0
    %316 = vmatprep.subr.mxu0 0.0
    %317 = vmatpush1.msra.mxu0 0.0
    %318 = vmatprep.subr.mxu0 0.0
    %319 = vmatpush1.msra.mxu0 0.0
    %320 = vmatprep.subr.mxu0 0.0
    %321 = vmatpush1.msra.mxu0 0.0
    %322 = vmatprep.subr.mxu0 0.0
    %323 = vmatpush1.msra.mxu0 0.0
    %324 = vmatprep.subr.mxu0 0.0
    %325 = vmatpush1.msra.mxu0 0.0
    %326 = vmatprep.subr.mxu0 0.0
    %327 = vmatpush1.msra.mxu0 0.0
    %328 = vmatprep.subr.mxu0 0.0
    %329 = vmatpush1.msra.mxu0 0.0
    %330 = vmatprep.subr.mxu0 0.0
    %331 = vmatpush1.msra.mxu0 0.0
    %332 = vmatprep.subr.mxu0 0.0
    %333 = vmatpush1.msra.mxu0 0.0
    %334 = vmatprep.subr.mxu0 0.0
    %335 = vmatpush1.msra.mxu0 0.0
    %336 = vmatprep.subr.mxu0 0.0
    %337 = vmatpush1.msra.mxu0 0.0
    %338 = vmatprep.subr.mxu0 0.0
    %339 = vmatpush1.msra.mxu0 0.0
    %340 = vmatprep.mubr.f32.mxu0 0.0
    %341 = vmatmul.mubr.f32.gmra.mrb[0].mxu0 %v274
    %v342 = vpop.f32.mrb[0].mxu0
    %v343 = vadd.f32 0.0, %v342
    %v344 = vpop.f32.mrb[0].mxu0
    %345 = vdwg.mxu0
    %v346 = vadd.f32 %v273, %v343
    %v347 = vxor.u32 %v346, 2147483648
    %v348 = vmul.f32 %v347, 1.442695
    %v349 = vpow.pop %v348
    %v350 = vadd.f32 %v349, 1.0
    %v351 = vrcp.pop %v350
    %v352 = vmul.f32 1.0, %v351
    %v353 = vtanh.pop %v346
    %v354 = vmul.f32 %v352, %v259
    %356 = vrot.lane.b32.xlu0 %v353, 64
    %v357 = vpop.permute.xlu0 %356
    %v359 = vmul.f32 %v352, %v357
    %361 = vrot.lane.b32.xlu0 %v359, 32
    %v362 = vpop.permute.xlu0 %361
    %v364 = vadd.f32 %v354, %v362
    %v365 = vtanh.pop %v364
    %367 = vrot.lane.b32.xlu0 %v365, 64
    %v368 = vpop.permute.xlu0 %367
    %v370 = vmul.f32 %v352, %v368
    %372 = vrot.lane.b32.xlu0 %v370, 32
    %v373 = vpop.permute.xlu0 %372
    %s375 = scalar_lea.vmem [#allocation9], 4
    %376 = vst.msk [vmem:[%s375] sm:$0x3] %vm165, %v373
    %s377 = scalar_lea.vmem [#allocation4], 6
    %v378 = vld [vmem:[%s377] sm:$0x3]
    %v379 = vsel %vm58, %v373, 0
    %381 = vmatprep.subr.mxu0 0.0
    %382 = vmatpush1.msra.mxu0 %v51
    %383 = vmatprep.subr.mxu0 0.0
    %384 = vmatpush1.msra.mxu0 %v52
    %385 = vmatprep.subr.mxu0 0.0
    %386 = vmatpush1.msra.mxu0 %v53
    %387 = vmatprep.subr.mxu0 0.0
    %388 = vmatpush1.msra.mxu0 %v54
    %389 = vmatprep.subr.mxu0 0.0
    %390 = vmatpush1.msra.mxu0 0.0
    %391 = vmatprep.subr.mxu0 0.0
    %392 = vmatpush1.msra.mxu0 0.0
    %393 = vmatprep.subr.mxu0 0.0
    %394 = vmatpush1.msra.mxu0 0.0
    %395 = vmatprep.subr.mxu0 0.0
    %396 = vmatpush1.msra.mxu0 0.0
    %397 = vmatprep.subr.mxu0 0.0
    %398 = vmatpush1.msra.mxu0 0.0
    %399 = vmatprep.subr.mxu0 0.0
    %400 = vmatpush1.msra.mxu0 0.0
    %401 = vmatprep.subr.mxu0 0.0
    %402 = vmatpush1.msra.mxu0 0.0
    %403 = vmatprep.subr.mxu0 0.0
    %404 = vmatpush1.msra.mxu0 0.0
    %405 = vmatprep.subr.mxu0 0.0
    %406 = vmatpush1.msra.mxu0 0.0
    %407 = vmatprep.subr.mxu0 0.0
    %408 = vmatpush1.msra.mxu0 0.0
    %409 = vmatprep.subr.mxu0 0.0
    %410 = vmatpush1.msra.mxu0 0.0
    %411 = vmatprep.subr.mxu0 0.0
    %412 = vmatpush1.msra.mxu0 0.0
    %413 = vmatprep.subr.mxu0 0.0
    %414 = vmatpush1.msra.mxu0 0.0
    %415 = vmatprep.subr.mxu0 0.0
    %416 = vmatpush1.msra.mxu0 0.0
    %417 = vmatprep.subr.mxu0 0.0
    %418 = vmatpush1.msra.mxu0 0.0
    %419 = vmatprep.subr.mxu0 0.0
    %420 = vmatpush1.msra.mxu0 0.0
    %421 = vmatprep.subr.mxu0 0.0
    %422 = vmatpush1.msra.mxu0 0.0
    %423 = vmatprep.subr.mxu0 0.0
    %424 = vmatpush1.msra.mxu0 0.0
    %425 = vmatprep.subr.mxu0 0.0
    %426 = vmatpush1.msra.mxu0 0.0
    %427 = vmatprep.subr.mxu0 0.0
    %428 = vmatpush1.msra.mxu0 0.0
    %429 = vmatprep.subr.mxu0 0.0
    %430 = vmatpush1.msra.mxu0 0.0
    %431 = vmatprep.subr.mxu0 0.0
    %432 = vmatpush1.msra.mxu0 0.0
    %433 = vmatprep.subr.mxu0 0.0
    %434 = vmatpush1.msra.mxu0 0.0
    %435 = vmatprep.subr.mxu0 0.0
    %436 = vmatpush1.msra.mxu0 0.0
    %437 = vmatprep.subr.mxu0 0.0
    %438 = vmatpush1.msra.mxu0 0.0
    %439 = vmatprep.subr.mxu0 0.0
    %440 = vmatpush1.msra.mxu0 0.0
    %441 = vmatprep.subr.mxu0 0.0
    %442 = vmatpush1.msra.mxu0 0.0
    %443 = vmatprep.subr.mxu0 0.0
    %444 = vmatpush1.msra.mxu0 0.0
    %445 = vmatprep.mubr.f32.mxu0 0.0
    %446 = vmatmul.mubr.f32.gmra.mrb[0].mxu0 %v379
    %v447 = vpop.f32.mrb[0].mxu0
    %v448 = vadd.f32 0.0, %v447
    %v449 = vpop.f32.mrb[0].mxu0
    %450 = vdwg.mxu0
    %v451 = vadd.f32 %v378, %v448
    %v452 = vxor.u32 %v451, 2147483648
    %v453 = vmul.f32 %v452, 1.442695
    %v454 = vpow.pop %v453
    %v455 = vadd.f32 %v454, 1.0
    %v456 = vrcp.pop %v455
    %v457 = vmul.f32 1.0, %v456
    %v458 = vtanh.pop %v451
    %v459 = vmul.f32 %v457, %v364
    %461 = vrot.lane.b32.xlu0 %v458, 64
    %v462 = vpop.permute.xlu0 %461
    %v464 = vmul.f32 %v457, %v462
    %466 = vrot.lane.b32.xlu0 %v464, 32
    %v467 = vpop.permute.xlu0 %466
    %v469 = vadd.f32 %v459, %v467
    %v470 = vtanh.pop %v469
    %472 = vrot.lane.b32.xlu0 %v470, 64
    %v473 = vpop.permute.xlu0 %472
    %v475 = vmul.f32 %v457, %v473
    %477 = vrot.lane.b32.xlu0 %v475, 32
    %v478 = vpop.permute.xlu0 %477
    %s480 = scalar_lea.vmem [#allocation9], 6
    %481 = vst.msk [vmem:[%s480] sm:$0x3] %vm165, %v478
    %s482 = scalar_lea.vmem [#allocation4], 8
    %v483 = vld [vmem:[%s482] sm:$0x3]
    %v484 = vsel %vm58, %v478, 0
    %486 = vmatprep.subr.mxu0 0.0
    %487 = vmatpush1.msra.mxu0 %v51
    %488 = vmatprep.subr.mxu0 0.0
    %489 = vmatpush1.msra.mxu0 %v52
    %490 = vmatprep.subr.mxu0 0.0
    %491 = vmatpush1.msra.mxu0 %v53
    %492 = vmatprep.subr.mxu0 0.0
    %493 = vmatpush1.msra.mxu0 %v54
    %494 = vmatprep.subr.mxu0 0.0
    %495 = vmatpush1.msra.mxu0 0.0
    %496 = vmatprep.subr.mxu0 0.0
    %497 = vmatpush1.msra.mxu0 0.0
    %498 = vmatprep.subr.mxu0 0.0
    %499 = vmatpush1.msra.mxu0 0.0
    %500 = vmatprep.subr.mxu0 0.0
    %501 = vmatpush1.msra.mxu0 0.0
    %502 = vmatprep.subr.mxu0 0.0
    %503 = vmatpush1.msra.mxu0 0.0
    %504 = vmatprep.subr.mxu0 0.0
    %505 = vmatpush1.msra.mxu0 0.0
    %506 = vmatprep.subr.mxu0 0.0
    %507 = vmatpush1.msra.mxu0 0.0
    %508 = vmatprep.subr.mxu0 0.0
    %509 = vmatpush1.msra.mxu0 0.0
    %510 = vmatprep.subr.mxu0 0.0
    %511 = vmatpush1.msra.mxu0 0.0
    %512 = vmatprep.subr.mxu0 0.0
    %513 = vmatpush1.msra.mxu0 0.0
    %514 = vmatprep.subr.mxu0 0.0
    %515 = vmatpush1.msra.mxu0 0.0
    %516 = vmatprep.subr.mxu0 0.0
    %517 = vmatpush1.msra.mxu0 0.0
    %518 = vmatprep.subr.mxu0 0.0
    %519 = vmatpush1.msra.mxu0 0.0
    %520 = vmatprep.subr.mxu0 0.0
    %521 = vmatpush1.msra.mxu0 0.0
    %522 = vmatprep.subr.mxu0 0.0
    %523 = vmatpush1.msra.mxu0 0.0
    %524 = vmatprep.subr.mxu0 0.0
    %525 = vmatpush1.msra.mxu0 0.0
    %526 = vmatprep.subr.mxu0 0.0
    %527 = vmatpush1.msra.mxu0 0.0
    %528 = vmatprep.subr.mxu0 0.0
    %529 = vmatpush1.msra.mxu0 0.0
    %530 = vmatprep.subr.mxu0 0.0
    %531 = vmatpush1.msra.mxu0 0.0
    %532 = vmatprep.subr.mxu0 0.0
    %533 = vmatpush1.msra.mxu0 0.0
    %534 = vmatprep.subr.mxu0 0.0
    %535 = vmatpush1.msra.mxu0 0.0
    %536 = vmatprep.subr.mxu0 0.0
    %537 = vmatpush1.msra.mxu0 0.0
    %538 = vmatprep.subr.mxu0 0.0
    %539 = vmatpush1.msra.mxu0 0.0
    %540 = vmatprep.subr.mxu0 0.0
    %541 = vmatpush1.msra.mxu0 0.0
    %542 = vmatprep.subr.mxu0 0.0
    %543 = vmatpush1.msra.mxu0 0.0
    %544 = vmatprep.subr.mxu0 0.0
    %545 = vmatpush1.msra.mxu0 0.0
    %546 = vmatprep.subr.mxu0 0.0
    %547 = vmatpush1.msra.mxu0 0.0
    %548 = vmatprep.subr.mxu0 0.0
    %549 = vmatpush1.msra.mxu0 0.0
    %550 = vmatprep.mubr.f32.mxu0 0.0
    %551 = vmatmul.mubr.f32.gmra.mrb[0].mxu0 %v484
    %v552 = vpop.f32.mrb[0].mxu0
    %v553 = vadd.f32 0.0, %v552
    %v554 = vpop.f32.mrb[0].mxu0
    %555 = vdwg.mxu0
    %v556 = vadd.f32 %v483, %v553
    %v557 = vxor.u32 %v556, 2147483648
    %v558 = vmul.f32 %v557, 1.442695
    %v559 = vpow.pop %v558
    %v560 = vadd.f32 %v559, 1.0
    %v561 = vrcp.pop %v560
    %v562 = vmul.f32 1.0, %v561
    %v563 = vtanh.pop %v556
    %v564 = vmul.f32 %v562, %v469
    %566 = vrot.lane.b32.xlu0 %v563, 64
    %v567 = vpop.permute.xlu0 %566
    %v569 = vmul.f32 %v562, %v567
    %571 = vrot.lane.b32.xlu0 %v569, 32
    %v572 = vpop.permute.xlu0 %571
    %v574 = vadd.f32 %v564, %v572
    %v575 = vtanh.pop %v574
    %577 = vrot.lane.b32.xlu0 %v575, 64
    %v578 = vpop.permute.xlu0 %577
    %v580 = vmul.f32 %v562, %v578
    %582 = vrot.lane.b32.xlu0 %v580, 32
    %v583 = vpop.permute.xlu0 %582
    %s585 = scalar_lea.vmem [#allocation9], 8
    %586 = vst.msk [vmem:[%s585] sm:$0x3] %vm165, %v583
    %s587 = scalar_lea.vmem [#allocation4], 10
    %v588 = vld [vmem:[%s587] sm:$0x3]
    %v589 = vsel %vm58, %v583, 0
    %591 = vmatprep.subr.mxu0 0.0
    %592 = vmatpush1.msra.mxu0 %v51
    %593 = vmatprep.subr.mxu0 0.0
    %594 = vmatpush1.msra.mxu0 %v52
    %595 = vmatprep.subr.mxu0 0.0
    %596 = vmatpush1.msra.mxu0 %v53
    %597 = vmatprep.subr.mxu0 0.0
    %598 = vmatpush1.msra.mxu0 %v54
    %599 = vmatprep.subr.mxu0 0.0
    %600 = vmatpush1.msra.mxu0 0.0
    %601 = vmatprep.subr.mxu0 0.0
    %602 = vmatpush1.msra.mxu0 0.0
    %603 = vmatprep.subr.mxu0 0.0
    %604 = vmatpush1.msra.mxu0 0.0
    %605 = vmatprep.subr.mxu0 0.0
    %606 = vmatpush1.msra.mxu0 0.0
    %607 = vmatprep.subr.mxu0 0.0
    %608 = vmatpush1.msra.mxu0 0.0
    %609 = vmatprep.subr.mxu0 0.0
    %610 = vmatpush1.msra.mxu0 0.0
    %611 = vmatprep.subr.mxu0 0.0
    %612 = vmatpush1.msra.mxu0 0.0
    %613 = vmatprep.subr.mxu0 0.0
    %614 = vmatpush1.msra.mxu0 0.0
    %615 = vmatprep.subr.mxu0 0.0
    %616 = vmatpush1.msra.mxu0 0.0
    %617 = vmatprep.subr.mxu0 0.0
    %618 = vmatpush1.msra.mxu0 0.0
    %619 = vmatprep.subr.mxu0 0.0
    %620 = vmatpush1.msra.mxu0 0.0
    %621 = vmatprep.subr.mxu0 0.0
    %622 = vmatpush1.msra.mxu0 0.0
    %623 = vmatprep.subr.mxu0 0.0
    %624 = vmatpush1.msra.mxu0 0.0
    %625 = vmatprep.subr.mxu0 0.0
    %626 = vmatpush1.msra.mxu0 0.0
    %627 = vmatprep.subr.mxu0 0.0
    %628 = vmatpush1.msra.mxu0 0.0
    %629 = vmatprep.subr.mxu0 0.0
    %630 = vmatpush1.msra.mxu0 0.0
    %631 = vmatprep.subr.mxu0 0.0
    %632 = vmatpush1.msra.mxu0 0.0
    %633 = vmatprep.subr.mxu0 0.0
    %634 = vmatpush1.msra.mxu0 0.0
    %635 = vmatprep.subr.mxu0 0.0
    %636 = vmatpush1.msra.mxu0 0.0
    %637 = vmatprep.subr.mxu0 0.0
    %638 = vmatpush1.msra.mxu0 0.0
    %639 = vmatprep.subr.mxu0 0.0
    %640 = vmatpush1.msra.mxu0 0.0
    %641 = vmatprep.subr.mxu0 0.0
    %642 = vmatpush1.msra.mxu0 0.0
    %643 = vmatprep.subr.mxu0 0.0
    %644 = vmatpush1.msra.mxu0 0.0
    %645 = vmatprep.subr.mxu0 0.0
    %646 = vmatpush1.msra.mxu0 0.0
    %647 = vmatprep.subr.mxu0 0.0
    %648 = vmatpush1.msra.mxu0 0.0
    %649 = vmatprep.subr.mxu0 0.0
    %650 = vmatpush1.msra.mxu0 0.0
    %651 = vmatprep.subr.mxu0 0.0
    %652 = vmatpush1.msra.mxu0 0.0
    %653 = vmatprep.subr.mxu0 0.0
    %654 = vmatpush1.msra.mxu0 0.0
    %655 = vmatprep.mubr.f32.mxu0 0.0
    %656 = vmatmul.mubr.f32.gmra.mrb[0].mxu0 %v589
    %v657 = vpop.f32.mrb[0].mxu0
    %v658 = vadd.f32 0.0, %v657
    %v659 = vpop.f32.mrb[0].mxu0
    %660 = vdwg.mxu0
    %v661 = vadd.f32 %v588, %v658
    %v662 = vxor.u32 %v661, 2147483648
    %v663 = vmul.f32 %v662, 1.442695
    %v664 = vpow.pop %v663
    %v665 = vadd.f32 %v664, 1.0
    %v666 = vrcp.pop %v665
    %v667 = vmul.f32 1.0, %v666
    %v668 = vtanh.pop %v661
    %v669 = vmul.f32 %v667, %v574
    %671 = vrot.lane.b32.xlu0 %v668, 64
    %v672 = vpop.permute.xlu0 %671
    %v674 = vmul.f32 %v667, %v672
    %676 = vrot.lane.b32.xlu0 %v674, 32
    %v677 = vpop.permute.xlu0 %676
    %v679 = vadd.f32 %v669, %v677
    %v680 = vtanh.pop %v679
    %682 = vrot.lane.b32.xlu0 %v680, 64
    %v683 = vpop.permute.xlu0 %682
    %v685 = vmul.f32 %v667, %v683
    %687 = vrot.lane.b32.xlu0 %v685, 32
    %v688 = vpop.permute.xlu0 %687
    %s690 = scalar_lea.vmem [#allocation9], 10
    %691 = vst.msk [vmem:[%s690] sm:$0x3] %vm165, %v688
    %s692 = scalar_lea.vmem [#allocation4], 12
    %v693 = vld [vmem:[%s692] sm:$0x3]
    %v694 = vsel %vm58, %v688, 0
    %696 = vmatprep.subr.mxu0 0.0
    %697 = vmatpush1.msra.mxu0 %v51
    %698 = vmatprep.subr.mxu0 0.0
    %699 = vmatpush1.msra.mxu0 %v52
    %700 = vmatprep.subr.mxu0 0.0
    %701 = vmatpush1.msra.mxu0 %v53
    %702 = vmatprep.subr.mxu0 0.0
    %703 = vmatpush1.msra.mxu0 %v54
    %704 = vmatprep.subr.mxu0 0.0
    %705 = vmatpush1.msra.mxu0 0.0
    %706 = vmatprep.subr.mxu0 0.0
    %707 = vmatpush1.msra.mxu0 0.0
    %708 = vmatprep.subr.mxu0 0.0
    %709 = vmatpush1.msra.mxu0 0.0
    %710 = vmatprep.subr.mxu0 0.0
    %711 = vmatpush1.msra.mxu0 0.0
    %712 = vmatprep.subr.mxu0 0.0
    %713 = vmatpush1.msra.mxu0 0.0
    %714 = vmatprep.subr.mxu0 0.0
    %715 = vmatpush1.msra.mxu0 0.0
    %716 = vmatprep.subr.mxu0 0.0
    %717 = vmatpush1.msra.mxu0 0.0
    %718 = vmatprep.subr.mxu0 0.0
    %719 = vmatpush1.msra.mxu0 0.0
    %720 = vmatprep.subr.mxu0 0.0
    %721 = vmatpush1.msra.mxu0 0.0
    %722 = vmatprep.subr.mxu0 0.0
    %723 = vmatpush1.msra.mxu0 0.0
    %724 = vmatprep.subr.mxu0 0.0
    %725 = vmatpush1.msra.mxu0 0.0
    %726 = vmatprep.subr.mxu0 0.0
    %727 = vmatpush1.msra.mxu0 0.0
    %728 = vmatprep.subr.mxu0 0.0
    %729 = vmatpush1.msra.mxu0 0.0
    %730 = vmatprep.subr.mxu0 0.0
    %731 = vmatpush1.msra.mxu0 0.0
    %732 = vmatprep.subr.mxu0 0.0
    %733 = vmatpush1.msra.mxu0 0.0
    %734 = vmatprep.subr.mxu0 0.0
    %735 = vmatpush1.msra.mxu0 0.0
    %736 = vmatprep.subr.mxu0 0.0
    %737 = vmatpush1.msra.mxu0 0.0
    %738 = vmatprep.subr.mxu0 0.0
    %739 = vmatpush1.msra.mxu0 0.0
    %740 = vmatprep.subr.mxu0 0.0
    %741 = vmatpush1.msra.mxu0 0.0
    %742 = vmatprep.subr.mxu0 0.0
    %743 = vmatpush1.msra.mxu0 0.0
    %744 = vmatprep.subr.mxu0 0.0
    %745 = vmatpush1.msra.mxu0 0.0
    %746 = vmatprep.subr.mxu0 0.0
    %747 = vmatpush1.msra.mxu0 0.0
    %748 = vmatprep.subr.mxu0 0.0
    %749 = vmatpush1.msra.mxu0 0.0
    %750 = vmatprep.subr.mxu0 0.0
    %751 = vmatpush1.msra.mxu0 0.0
    %752 = vmatprep.subr.mxu0 0.0
    %753 = vmatpush1.msra.mxu0 0.0
    %754 = vmatprep.subr.mxu0 0.0
    %755 = vmatpush1.msra.mxu0 0.0
    %756 = vmatprep.subr.mxu0 0.0
    %757 = vmatpush1.msra.mxu0 0.0
    %758 = vmatprep.subr.mxu0 0.0
    %759 = vmatpush1.msra.mxu0 0.0
    %760 = vmatprep.mubr.f32.mxu0 0.0
    %761 = vmatmul.mubr.f32.gmra.mrb[0].mxu0 %v694
    %v762 = vpop.f32.mrb[0].mxu0
    %v763 = vadd.f32 0.0, %v762
    %v764 = vpop.f32.mrb[0].mxu0
    %765 = vdwg.mxu0
    %v766 = vadd.f32 %v693, %v763
    %v767 = vxor.u32 %v766, 2147483648
    %v768 = vmul.f32 %v767, 1.442695
    %v769 = vpow.pop %v768
    %v770 = vadd.f32 %v769, 1.0
    %v771 = vrcp.pop %v770
    %v772 = vmul.f32 1.0, %v771
    %v773 = vtanh.pop %v766
    %v774 = vmul.f32 %v772, %v679
    %776 = vrot.lane.b32.xlu0 %v773, 64
    %v777 = vpop.permute.xlu0 %776
    %v779 = vmul.f32 %v772, %v777
    %781 = vrot.lane.b32.xlu0 %v779, 32
    %v782 = vpop.permute.xlu0 %781
    %v784 = vadd.f32 %v774, %v782
    %v785 = vtanh.pop %v784
    %787 = vrot.lane.b32.xlu0 %v785, 64
    %v788 = vpop.permute.xlu0 %787
    %v790 = vmul.f32 %v772, %v788
    %792 = vrot.lane.b32.xlu0 %v790, 32
    %v793 = vpop.permute.xlu0 %792
    %s795 = scalar_lea.vmem [#allocation9], 12
    %796 = vst.msk [vmem:[%s795] sm:$0x3] %vm165, %v793
    %s797 = scalar_lea.vmem [#allocation4], 14
    %v798 = vld [vmem:[%s797] sm:$0x3]
    %v799 = vsel %vm58, %v793, 0
    %801 = vmatprep.subr.mxu0 0.0
    %802 = vmatpush1.msra.mxu0 %v51
    %803 = vmatprep.subr.mxu0 0.0
    %804 = vmatpush1.msra.mxu0 %v52
    %805 = vmatprep.subr.mxu0 0.0
    %806 = vmatpush1.msra.mxu0 %v53
    %807 = vmatprep.subr.mxu0 0.0
    %808 = vmatpush1.msra.mxu0 %v54
    %809 = vmatprep.subr.mxu0 0.0
    %810 = vmatpush1.msra.mxu0 0.0
    %811 = vmatprep.subr.mxu0 0.0
    %812 = vmatpush1.msra.mxu0 0.0
    %813 = vmatprep.subr.mxu0 0.0
    %814 = vmatpush1.msra.mxu0 0.0
    %815 = vmatprep.subr.mxu0 0.0
    %816 = vmatpush1.msra.mxu0 0.0
    %817 = vmatprep.subr.mxu0 0.0
    %818 = vmatpush1.msra.mxu0 0.0
    %819 = vmatprep.subr.mxu0 0.0
    %820 = vmatpush1.msra.mxu0 0.0
    %821 = vmatprep.subr.mxu0 0.0
    %822 = vmatpush1.msra.mxu0 0.0
    %823 = vmatprep.subr.mxu0 0.0
    %824 = vmatpush1.msra.mxu0 0.0
    %825 = vmatprep.subr.mxu0 0.0
    %826 = vmatpush1.msra.mxu0 0.0
    %827 = vmatprep.subr.mxu0 0.0
    %828 = vmatpush1.msra.mxu0 0.0
    %829 = vmatprep.subr.mxu0 0.0
    %830 = vmatpush1.msra.mxu0 0.0
    %831 = vmatprep.subr.mxu0 0.0
    %832 = vmatpush1.msra.mxu0 0.0
    %833 = vmatprep.subr.mxu0 0.0
    %834 = vmatpush1.msra.mxu0 0.0
    %835 = vmatprep.subr.mxu0 0.0
    %836 = vmatpush1.msra.mxu0 0.0
    %837 = vmatprep.subr.mxu0 0.0
    %838 = vmatpush1.msra.mxu0 0.0
    %839 = vmatprep.subr.mxu0 0.0
    %840 = vmatpush1.msra.mxu0 0.0
    %841 = vmatprep.subr.mxu0 0.0
    %842 = vmatpush1.msra.mxu0 0.0
    %843 = vmatprep.subr.mxu0 0.0
    %844 = vmatpush1.msra.mxu0 0.0
    %845 = vmatprep.subr.mxu0 0.0
    %846 = vmatpush1.msra.mxu0 0.0
    %847 = vmatprep.subr.mxu0 0.0
    %848 = vmatpush1.msra.mxu0 0.0
    %849 = vmatprep.subr.mxu0 0.0
    %850 = vmatpush1.msra.mxu0 0.0
    %851 = vmatprep.subr.mxu0 0.0
    %852 = vmatpush1.msra.mxu0 0.0
    %853 = vmatprep.subr.mxu0 0.0
    %854 = vmatpush1.msra.mxu0 0.0
    %855 = vmatprep.subr.mxu0 0.0
    %856 = vmatpush1.msra.mxu0 0.0
    %857 = vmatprep.subr.mxu0 0.0
    %858 = vmatpush1.msra.mxu0 0.0
    %859 = vmatprep.subr.mxu0 0.0
    %860 = vmatpush1.msra.mxu0 0.0
    %861 = vmatprep.subr.mxu0 0.0
    %862 = vmatpush1.msra.mxu0 0.0
    %863 = vmatprep.subr.mxu0 0.0
    %864 = vmatpush1.msra.mxu0 0.0
    %865 = vmatprep.mubr.f32.mxu0 0.0
    %866 = vmatmul.mubr.f32.gmra.mrb[0].mxu0 %v799
    %v867 = vpop.f32.mrb[0].mxu0
    %v868 = vadd.f32 0.0, %v867
    %v869 = vpop.f32.mrb[0].mxu0
    %870 = vdwg.mxu0
    %v871 = vadd.f32 %v798, %v868
    %v872 = vxor.u32 %v871, 2147483648
    %v873 = vmul.f32 %v872, 1.442695
    %v874 = vpow.pop %v873
    %v875 = vadd.f32 %v874, 1.0
    %v876 = vrcp.pop %v875
    %v877 = vmul.f32 1.0, %v876
    %v878 = vtanh.pop %v871
    %v879 = vmul.f32 %v877, %v784
    %881 = vrot.lane.b32.xlu0 %v878, 64
    %v882 = vpop.permute.xlu0 %881
    %v884 = vmul.f32 %v877, %v882
    %886 = vrot.lane.b32.xlu0 %v884, 32
    %v887 = vpop.permute.xlu0 %886
    %v889 = vadd.f32 %v879, %v887
    %v890 = vtanh.pop %v889
    %892 = vrot.lane.b32.xlu0 %v890, 64
    %v893 = vpop.permute.xlu0 %892
    %v895 = vmul.f32 %v877, %v893
    %897 = vrot.lane.b32.xlu0 %v895, 32
    %v898 = vpop.permute.xlu0 %897
    %s900 = scalar_lea.vmem [#allocation9], 14
    %901 = vst.msk [vmem:[%s900] sm:$0x3] %vm165, %v898
    %902 = vst.msk [vmem:[#allocation2] sm:$0x3] %vm165, %v898
    %904 = vrot.lane.b32.xlu0 %v889, 96
    %v905 = vpop.permute.xlu0 %904
    %907 = vst.msk [vmem:[#allocation3] sm:$0x3] %vm165, %v905
    // Predicated region
    $region22: #{tpu_custom_call.1} parent=1 // pred_check
      %p908 = pneg %p44
    $region23: #{tpu_custom_call.1} parent=1 // pred_check_branch
      %910 = sbr.rel (%p908) target = $region25
    $region24: #{tpu_custom_call.1} parent=1 // pred_region
      %911 = vst.msk [vmem:[#allocation10] sm:$0x3] %vm165, %v898
      %912 = vst.msk [vmem:[#allocation12] sm:$0x3] %vm165, %v905
    $region25: #{tpu_custom_call.1} parent=1 // pred_fallthru
      _
    // Predicated region
    $region26: #{tpu_custom_call.1} parent=1 // pred_check
      _
    $region27: #{tpu_custom_call.1} parent=1 // pred_check_branch
      %914 = sbr.rel (0) target = $region29
    $region28: #{tpu_custom_call.1} parent=1 // pred_region
      %s916 = ssub.s32 256, 256
      %917 = vsyncadd [#allocation6], %s916
      %s918 = sshll.u32 [#allocation9], 4
      %s919 = int_to_ptr.vmem [resolvable:$true] %s918
      %924 = dma.vmem_to_hbm [thread:$0]  %s919, 256, %s2, [#allocation6], 32, 32, 2
    $region29: #{tpu_custom_call.1} parent=1 // pred_fallthru
      _
    // Predicated region
    $region30: #{tpu_custom_call.1} parent=1 // pred_check
      _
    $region31: #{tpu_custom_call.1} parent=1 // pred_check_branch
      %926 = sbr.rel (0) target = $region33
    $region32: #{tpu_custom_call.1} parent=1 // pred_region
      %s928 = ssub.s32 32, 32
      %929 = vsyncadd [#allocation11], %s928
      %s931 = sshll.u32 [#allocation10], 4
      %s932 = int_to_ptr.vmem [resolvable:$true] %s931
      %934 = dma.vmem_to_hbm [thread:$0]  %s932, 32, %s3, [#allocation11]
    $region33: #{tpu_custom_call.1} parent=1 // pred_fallthru
      _
    // Predicated region
    $region34: #{tpu_custom_call.1} parent=1 // pred_check
      _
    $region35: #{tpu_custom_call.1} parent=1 // pred_check_branch
      %936 = sbr.rel (0) target = $region37
    $region36: #{tpu_custom_call.1} parent=1 // pred_region
      %s938 = ssub.s32 32, 32
      %939 = vsyncadd [#allocation11], %s938
      %s941 = sshll.u32 [#allocation12], 4
      %s942 = int_to_ptr.vmem [resolvable:$true] %s941
      %944 = dma.vmem_to_hbm [thread:$0]  %s942, 32, %s4, [#allocation11]
    $region37: #{tpu_custom_call.1} parent=1 // pred_fallthru
      _
    // Predicated region
    $region38: #{tpu_custom_call.1} parent=1 // pred_check
      _
    $region39: #{tpu_custom_call.1} parent=1 // pred_check_branch
      %946 = sbr.rel (0) target = $region41
    $region40: #{tpu_custom_call.1} parent=1 // pred_region
      %947 = dma.done [#allocation6], 256
    $region41: #{tpu_custom_call.1} parent=1 // pred_fallthru
      _
    // Predicated region
    $region42: #{tpu_custom_call.1} parent=1 // pred_check
      _
    $region43: #{tpu_custom_call.1} parent=1 // pred_check_branch
      %949 = sbr.rel (0) target = $region45
    $region44: #{tpu_custom_call.1} parent=1 // pred_region
      %950 = dma.done [#allocation11], 32
    $region45: #{tpu_custom_call.1} parent=1 // pred_fallthru
      _
    // Predicated region
    $region46: #{tpu_custom_call.1} parent=1 // pred_check
      _
    $region47: #{tpu_custom_call.1} parent=1 // pred_check_branch
      %952 = sbr.rel (0) target = $region49
    $region48: #{tpu_custom_call.1} parent=1 // pred_region
      %953 = dma.done [#allocation11], 32
    $region49: #{tpu_custom_call.1} parent=1 // pred_fallthru
      _
    %954 = vsyncpa [#allocation5], 1
    %955 = vsyncpa [#allocation8], 1
    %956 = vsyncpa [#allocation6], 1
    %957 = vsyncpa [#allocation11], 1

</llo_original>
